<compile_context>
chip_gen: v6e
topology: v6e:2x2x1
jax: 0.10.0
libtpu: 0.0.40
codegen_flags: <defaults>
</compile_context>

<pallas_src>
import functools

import jax
import jax.numpy as jnp
from jax import lax
from jax.experimental import pallas as pl
from jax.experimental.pallas import tpu as pltpu

TM_CAP = 512        # M-tile cap (rows of the activation / im2col matrix)
TN_CAP = 512        # N-tile cap (output channels)
K_SINGLE = 4096     # K <= this  -> single K block, no acc scratch
TK_MULTI = 2048     # K tile for multi-K reductions (LSTM, big head convs)


def _round_up(x, m):
    return (x + m - 1) // m * m


@functools.lru_cache(maxsize=None)
def _vmem_limit_bytes():
    # Gate the scoped-VMEM bump on the actual chip (v7x has only 64 MiB).
    try:
        cap = int(pltpu.get_tpu_info().vmem_capacity_bytes)
        return int(min(cap * 3 // 4, 96 * 1024 * 1024))
    except Exception:
        return None


def _compiler_params(sem):
    return pltpu.CompilerParams(dimension_semantics=sem,
                                vmem_limit_bytes=_vmem_limit_bytes())


def _apply_act(y, act):
    if act == "relu":
        return jnp.maximum(y, 0.0)
    if act == "sigmoid":
        return jax.nn.sigmoid(y)
    return y


# ----------------------------------------------------------------------------
# Fused conv GEMM kernels:  out = act(A @ W + b), branch-batched on axis 0
# ----------------------------------------------------------------------------
def _gemm_k1_kernel(a_ref, w_ref, b_ref, o_ref, *, act):
    # Single K block: skip the f32 scratch round-trip, store directly.
    y = jnp.dot(a_ref[...], w_ref[...], preferred_element_type=jnp.float32)
    o_ref[...] = _apply_act(y + b_ref[...], act).astype(o_ref.dtype)


def _gemm_kernel(a_ref, w_ref, b_ref, o_ref, acc_ref, *, act):
    @pl.when(pl.program_id(3) == 0)
    def _():
        acc_ref[...] = jnp.zeros_like(acc_ref)

    acc_ref[...] += jnp.dot(a_ref[...], w_ref[...],
                            preferred_element_type=jnp.float32)

    @pl.when(pl.program_id(3) == pl.num_programs(3) - 1)
    def _():
        o_ref[...] = _apply_act(acc_ref[...] + b_ref[...],
                                act).astype(o_ref.dtype)


def _pick_tn(n):
    if n <= TN_CAP:
        return n
    for t in (512, 256, 128):
        if n % t == 0:
            return t
    return n


def pallas_gemm(a, w, b, act="none", out_dtype=jnp.bfloat16):
    """Branch-batched act(A @ W + b).
       a: (B, M, Kp) bf16; w: (B, Kp, N) bf16; b: (B, 1, N) f32 -> (B, M, N)."""
    B, M, Kp = a.shape
    _, _, N = w.shape
    TM = min(TM_CAP, _round_up(M, 16))
    TN = _pick_tn(N)
    nm, nn = pl.cdiv(M, TM), pl.cdiv(N, TN)

    if Kp <= K_SINGLE:
        grid = (B, nm, nn)
        kernel = functools.partial(_gemm_k1_kernel, act=act)
        in_specs = [pl.BlockSpec((None, TM, Kp), lambda bi, i, j: (bi, i, 0)),
                    pl.BlockSpec((None, Kp, TN), lambda bi, i, j: (bi, 0, j)),
                    pl.BlockSpec((None, 1, TN), lambda bi, i, j: (bi, 0, j))]
        out_spec = pl.BlockSpec((None, TM, TN), lambda bi, i, j: (bi, i, j))
        scratch = []
        sem = ("parallel", "parallel", "parallel")
    else:
        assert Kp % TK_MULTI == 0, Kp
        TK = TK_MULTI
        grid = (B, nm, nn, Kp // TK)
        kernel = functools.partial(_gemm_kernel, act=act)
        in_specs = [pl.BlockSpec((None, TM, TK), lambda bi, i, j, k: (bi, i, k)),
                    pl.BlockSpec((None, TK, TN), lambda bi, i, j, k: (bi, k, j)),
                    pl.BlockSpec((None, 1, TN), lambda bi, i, j, k: (bi, 0, j))]
        out_spec = pl.BlockSpec((None, TM, TN), lambda bi, i, j, k: (bi, i, j))
        scratch = [pltpu.VMEM((TM, TN), jnp.float32)]
        sem = ("parallel", "parallel", "parallel", "arbitrary")

    return pl.pallas_call(
        kernel,
        out_shape=jax.ShapeDtypeStruct((B, M, N), out_dtype),
        grid_spec=pltpu.PrefetchScalarGridSpec(
            num_scalar_prefetch=0, grid=grid,
            in_specs=in_specs, out_specs=out_spec, scratch_shapes=scratch),
        compiler_params=_compiler_params(sem),
    )(a.astype(jnp.bfloat16), w, b)


# ----------------------------------------------------------------------------
# Fused ConvLSTM kernel: gates GEMM + gate nonlinearities + cell update,
# batched over the two (temp / shot) branches on the leading grid axis.
# ----------------------------------------------------------------------------
def _lstm_kernel(a_ref, w_ref, b_ref, cprev_ref, h_ref, c_ref, acc_ref, *,
                 hidden):
    @pl.when(pl.program_id(2) == 0)
    def _():
        acc_ref[...] = jnp.zeros_like(acc_ref)

    acc_ref[...] += jnp.dot(a_ref[...], w_ref[...],
                            preferred_element_type=jnp.float32)

    @pl.when(pl.program_id(2) == pl.num_programs(2) - 1)
    def _():
        g = acc_ref[...] + b_ref[...]
        in_gate = jax.nn.sigmoid(g[:, 0 * hidden:1 * hidden])
        remember_gate = jax.nn.sigmoid(g[:, 1 * hidden:2 * hidden])
        out_gate = jax.nn.sigmoid(g[:, 2 * hidden:3 * hidden])
        cell_gate = jnp.tanh(g[:, 3 * hidden:4 * hidden])
        c_new = remember_gate * cprev_ref[...] + in_gate * cell_gate
        h_ref[...] = (out_gate * jnp.tanh(c_new)).astype(h_ref.dtype)
        c_ref[...] = c_new


def pallas_lstm(a, w, b, c_prev, hidden):
    """a: (2, M, Kp) bf16; w: (2, Kp, 4h) bf16; b: (2, 1, 4h) f32;
       c_prev: (2, M, h) f32 -> (h_new bf16, c_new f32), each (2, M, h)."""
    _, M, Kp = a.shape
    TM = min(TM_CAP, _round_up(M, 16))
    if Kp <= K_SINGLE:
        TK = Kp
    else:
        assert Kp % TK_MULTI == 0, Kp
        TK = TK_MULTI
    grid = (2, pl.cdiv(M, TM), Kp // TK)
    out_shapes = (jax.ShapeDtypeStruct((2, M, hidden), jnp.bfloat16),
                  jax.ShapeDtypeStruct((2, M, hidden), jnp.float32))
    return pl.pallas_call(
        functools.partial(_lstm_kernel, hidden=hidden),
        out_shape=out_shapes,
        grid_spec=pltpu.PrefetchScalarGridSpec(
            num_scalar_prefetch=0,
            grid=grid,
            in_specs=[
                pl.BlockSpec((None, TM, TK), lambda bi, i, k: (bi, i, k)),
                pl.BlockSpec((None, TK, 4 * hidden), lambda bi, i, k: (bi, k, 0)),
                pl.BlockSpec((None, 1, 4 * hidden), lambda bi, i, k: (bi, 0, 0)),
                pl.BlockSpec((None, TM, hidden), lambda bi, i, k: (bi, i, 0)),
            ],
            out_specs=(pl.BlockSpec((None, TM, hidden), lambda bi, i, k: (bi, i, 0)),
                       pl.BlockSpec((None, TM, hidden), lambda bi, i, k: (bi, i, 0))),
            scratch_shapes=[pltpu.VMEM((TM, 4 * hidden), jnp.float32)]),
        compiler_params=_compiler_params(("parallel", "parallel", "arbitrary")),
    )(a, w, b, c_prev)


# ----------------------------------------------------------------------------
# NHWC conv / pool glue built on the fused Pallas GEMM
# ----------------------------------------------------------------------------
def _im2col_nhwc(x, kh, kw, stride, padding, k_target):
    """x: (N, H, W, C) -> (N*Hout*Wout, k_target) with kh*kw*C patch columns
    (zero-filled up to k_target so the K grid never has a ragged block)."""
    n = x.shape[0]
    if padding > 0:
        x = jnp.pad(x, ((0, 0), (padding, padding), (padding, padding), (0, 0)))
    hp, wp, c = x.shape[1], x.shape[2], x.shape[3]
    hout = (hp - kh) // stride + 1
    wout = (wp - kw) // stride + 1
    cols = []
    for dy in range(kh):
        for dx in range(kw):
            cols.append(x[:, dy:dy + stride * (hout - 1) + 1:stride,
                          dx:dx + stride * (wout - 1) + 1:stride, :])
    k = kh * kw * c
    if k_target > k:
        cols.append(jnp.zeros((n, hout, wout, k_target - k), x.dtype))
    patches = jnp.concatenate(cols, axis=-1)
    return patches.reshape(n * hout * wout, k_target), hout, wout


def conv2d_nhwc(x, p, act="none", stride=1, padding=0, out_dtype=jnp.bfloat16):
    """x: (Nb, H, W, Cin) -> (Nb, Hout, Wout, Cout); fused bias + act.
    The branch count B is taken from the weight (B, Kp, Cout); the batch axis
    of x must be branch-major with Nb % B == 0."""
    nb = x.shape[0]
    B = p["w"].shape[0]
    assert nb % B == 0, (nb, B)
    x = x.astype(jnp.bfloat16)
    kh, kw = p["kh"], p["kw"]
    if kh == 1 and kw == 1 and stride == 1 and padding == 0:
        h, w, c = x.shape[1], x.shape[2], x.shape[3]
        a = x.reshape(B, (nb // B) * h * w, c)
        if p["kp"] != c:
            a = jnp.pad(a, ((0, 0), (0, 0), (0, p["kp"] - c)))
        y = pallas_gemm(a, p["w"], p["b"], act, out_dtype)
        return y.reshape(nb, h, w, -1)
    a, hout, wout = _im2col_nhwc(x, kh, kw, stride, padding, p["kp"])
    a = a.reshape(B, (nb // B) * hout * wout, p["kp"])
    y = pallas_gemm(a, p["w"], p["b"], act, out_dtype)
    return y.reshape(nb, hout, wout, -1)


def maxpool_ceil(x, k=3, s=2):
    # nn.MaxPool2d(kernel_size=3, stride=2, ceil_mode=True), padding=0 (NHWC).
    _, h, w, _ = x.shape
    hout = -(-(h - k) // s) + 1
    wout = -(-(w - k) // s) + 1
    ph = max((hout - 1) * s + k - h, 0)
    pw = max((wout - 1) * s + k - w, 0)
    init = jnp.array(-jnp.inf, dtype=x.dtype)
    return lax.reduce_window(
        x, init, lax.max,
        window_dimensions=(1, k, k, 1),
        window_strides=(1, s, s, 1),
        padding=((0, 0), (0, ph), (0, pw), (0, 0)))


def l2_normalize(v, eps=1e-12):
    # F.normalize(v, dim=1)
    v = v.astype(jnp.float32)
    norm = jnp.sqrt(jnp.sum(v * v, axis=1, keepdims=True))
    return v / jnp.maximum(norm, eps)


# ----------------------------------------------------------------------------
# SqueezeNet-1.1 features[:12] (fire expand fused, channel-padded to 128)
# ----------------------------------------------------------------------------
FIRE_CFGS = [(64, 16, 64, 64), (128, 16, 64, 64),
             (128, 32, 128, 128), (256, 32, 128, 128),
             (256, 48, 192, 192), (384, 48, 192, 192), (384, 64, 256, 256)]


def fire(x, p):
    s = conv2d_nhwc(x, p["sq"], act="relu")                 # (N,H,W,128) padded
    return conv2d_nhwc(s, p["ex"], act="relu", padding=1)   # (N,H,W,e1+e3)


def squeezenet_features(x, p):
    x = conv2d_nhwc(x, p["conv1"], act="relu", stride=2, padding=0)
    x = maxpool_ceil(x)
    x = fire(x, p["fires"][0])
    x = fire(x, p["fires"][1])
    x = maxpool_ceil(x)
    x = fire(x, p["fires"][2])
    x = fire(x, p["fires"][3])
    x = maxpool_ceil(x)
    x = fire(x, p["fires"][4])
    x = fire(x, p["fires"][5])
    x = fire(x, p["fires"][6])
    return x


# ----------------------------------------------------------------------------
# ConvLSTM step (both branches in one fused pallas_call) + prediction heads
# ----------------------------------------------------------------------------
def conv_lstm_step(x_both, h_prev, c_prev, p_lstm, hidden):
    # x_both: (2*bs, H, W, 512) bf16 branch-major; h_prev: (2, bs, H, W, h) bf16;
    # c_prev: (2, bs, H, W, h) f32.
    bs2, hh, ww, _ = x_both.shape
    bs = bs2 // 2
    ksz, kp = p_lstm["k"], p_lstm["kp"]
    pad = ksz // 2
    stacked = jnp.concatenate(
        [x_both, h_prev.reshape(bs2, hh, ww, hidden).astype(jnp.bfloat16)],
        axis=-1)
    a, ho, wo = _im2col_nhwc(stacked, ksz, ksz, 1, pad, kp)   # (2*bs*H*W, Kp)
    a = a.reshape(2, bs * ho * wo, kp)
    c_flat = c_prev.reshape(2, bs * hh * ww, hidden)
    h_new, c_new = pallas_lstm(a, p_lstm["w"], p_lstm["b"], c_flat, hidden)
    return (h_new.reshape(2, bs, hh, ww, hidden),
            c_new.reshape(2, bs, hh, ww, hidden))


def head(x, p):
    # Sequential(MaxPool2d(3,2,ceil), Conv2d(k=6,pad=3), Sigmoid, Conv2d(k=1), Sigmoid)
    x = maxpool_ceil(x)
    y = conv2d_nhwc(x, p["c1"], act="sigmoid", padding=3, out_dtype=jnp.float32)
    n, hh, ww, c = y.shape
    # Tiny Cout=3 1x1 conv: plain XLA dot (padding to 128 lanes is pure waste).
    # w2 rows for the padded c1 channels are zero -> exact despite sigmoid(0)=0.5.
    z = jax.nn.sigmoid(jnp.dot(y.reshape(-1, c), p["w2"],
                               preferred_element_type=jnp.float32) + p["b2"])
    return z.reshape(n, hh, ww, 3)


# ----------------------------------------------------------------------------
# TCCNet forward
# ----------------------------------------------------------------------------
def tccnet_forward(params, seq_temp, seq_shot):
    hidden = params["hidden_size"]
    bs, ts, nc, h, w = seq_temp.shape

    # NCHW -> NHWC once at the boundary; stack temp/shot on the batch axis so
    # both branches run through one branch-batched SqueezeNet pass.
    xt = seq_temp.reshape(bs * ts, nc, h, w).transpose(0, 2, 3, 1)
    xs = seq_shot.reshape(bs * ts, nc, h, w).transpose(0, 2, 3, 1)
    x = jnp.concatenate([xt, xs], axis=0).astype(jnp.bfloat16)  # (2*bs*ts,...)

    e = squeezenet_features(x, params["sq"])                 # (2*bs*ts, Ht, Wt, 512)
    _, ht, wt, cf = e.shape
    e = e.reshape(2, bs, ts, ht, wt, cf)

    h_state = jnp.zeros((2, bs, ht, wt, hidden), jnp.bfloat16)
    c_state = jnp.zeros((2, bs, ht, wt, hidden), jnp.float32)

    preds_t, preds_s = [], []
    for t in range(ts):
        x_both = e[:, :, t].reshape(2 * bs, ht, wt, cf)
        h_state, c_state = conv_lstm_step(x_both, h_state, c_state,
                                          params["lstm"], hidden)
        # fc_pred shares weights across branches: stack along batch, run once.
        hb = h_state.reshape(2 * bs, ht, wt, hidden)
        p = head(hb, params["fc_pred"])                      # (2*bs, h', w', 3)
        p = l2_normalize(p.sum(axis=(1, 2)))                 # (2*bs, 3)
        preds_t.append(p[:bs][None])
        preds_s.append(p[bs:][None])

    preds_temp = jnp.concatenate(preds_t, axis=0)            # (ts, bs, 3)
    preds_shot = jnp.concatenate(preds_s, axis=0)            # (ts, bs, 3)

    out = jnp.concatenate([h_state[0], h_state[1]], axis=-1)  # channel concat
    out = head(out, params["fc"])
    out = l2_normalize(out.sum(axis=(1, 2)))                 # (bs, 3)
    return out, preds_temp, preds_shot


# ----------------------------------------------------------------------------
# Deterministic parameter construction (GEMM-ready: pre-transposed, K-padded,
# Cout-padded to 128, bf16 weights / f32 biases, done once at init)
# ----------------------------------------------------------------------------
def _he_conv(key, cout, cin, kh, kw):
    w = jax.random.normal(key, (cout, cin, kh, kw), jnp.float32)
    w = w * jnp.sqrt(2.0 / (cin * kh * kw))
    b = jnp.zeros((cout,), jnp.float32)
    return w, b


def _conv_to_gemm(w, b, cin_pad=None, cout_pad=None):
    """PyTorch (Cout, Cin, kh, kw) -> GEMM weight dict with leading branch=1 axis.
    cin_pad : zero-extend input channels (zero K-rows) to this count.
    cout_pad: zero-extend output channels (zero cols + zero bias) to this count.
    A-column order matches _im2col_nhwc: (dy*kw + dx)*Cin_pad + cin."""
    cout, cin, kh, kw = w.shape
    cin_p = cin if cin_pad is None else max(cin_pad, cin)
    cout_p = cout if cout_pad is None else max(cout_pad, cout)
    wm = jnp.transpose(w, (2, 3, 1, 0))                      # (kh, kw, cin, cout)
    if cin_p > cin:
        wm = jnp.pad(wm, ((0, 0), (0, 0), (0, cin_p - cin), (0, 0)))
    if cout_p > cout:
        wm = jnp.pad(wm, ((0, 0), (0, 0), (0, 0), (0, cout_p - cout)))
        b = jnp.pad(b, (0, cout_p - cout))
    k = kh * kw * cin_p
    kp = _round_up(k, 128) if k <= K_SINGLE else _round_up(k, TK_MULTI)
    wm = wm.reshape(k, cout_p)
    if kp > k:
        wm = jnp.pad(wm, ((0, kp - k), (0, 0)))
    return dict(w=wm.astype(jnp.bfloat16)[None],             # (1, Kp, Cout_p)
                b=b.reshape(1, 1, cout_p).astype(jnp.float32),
                kh=kh, kw=kw, kp=kp)


def _fused_expand(w_e1, b_e1, w_e3, b_e3, cin_pad):
    """Fuse fire expand1x1 + expand3x3 into one 3x3 conv: the e1 block is
    nonzero only on the center tap. Output channel order = [e1, e3]."""
    e1, sq = w_e1.shape[0], w_e1.shape[1]
    e3 = w_e3.shape[0]
    w = jnp.zeros((e1 + e3, sq, 3, 3), jnp.float32)
    w = w.at[:e1, :, 1, 1].set(w_e1[:, :, 0, 0])
    w = w.at[e1:, :, :, :].set(w_e3)
    b = jnp.concatenate([b_e1, b_e3])
    return _conv_to_gemm(w, b, cin_pad=cin_pad)


def _stack_branches(pa, pb):
    assert pa["kp"] == pb["kp"] and pa["kh"] == pb["kh"] and pa["kw"] == pb["kw"]
    return dict(w=jnp.concatenate([pa["w"], pb["w"]], axis=0),
                b=jnp.concatenate([pa["b"], pb["b"]], axis=0),
                kh=pa["kh"], kw=pa["kw"], kp=pa["kp"])


def init_squeezenet_branch(key):
    keys = jax.random.split(key, 1 + 3 * len(FIRE_CFGS))
    # conv1 Cout 64 -> padded to 128; fire1's squeeze absorbs it as zero K-rows.
    conv1 = _conv_to_gemm(*_he_conv(keys[0], 64, 3, 3, 3), cout_pad=128)
    fires = []
    for i, (cin, sq, e1, e3) in enumerate(FIRE_CFGS):
        k0, k1, k2 = keys[1 + 3 * i:4 + 3 * i]
        cin_p = 128 if i == 0 else cin            # runtime input channel count
        wsq, bsq = _he_conv(k0, sq, cin, 1, 1)
        we1, be1 = _he_conv(k1, e1, sq, 1, 1)
        we3, be3 = _he_conv(k2, e3, sq, 3, 3)
        fires.append(dict(
            sq=_conv_to_gemm(wsq, bsq, cin_pad=cin_p, cout_pad=128),
            ex=_fused_expand(we1, be1, we3, be3, cin_pad=128)))
    return dict(conv1=conv1, fires=fires)


def stack_squeezenet(pt, ps):
    return dict(
        conv1=_stack_branches(pt["conv1"], ps["conv1"]),
        fires=[dict(sq=_stack_branches(a["sq"], b["sq"]),
                    ex=_stack_branches(a["ex"], b["ex"]))
               for a, b in zip(pt["fires"], ps["fires"])])


def init_tccnet_params(key, hidden_size=128, kernel_size=5):
    ks = jax.random.split(key, 8)
    sq = stack_squeezenet(init_squeezenet_branch(ks[0]),
                          init_squeezenet_branch(ks[1]))

    lstm_in = 512 + hidden_size
    wt, bt = _he_conv(ks[2], 4 * hidden_size, lstm_in, kernel_size, kernel_size)
    wsh, bsh = _he_conv(ks[3], 4 * hidden_size, lstm_in, kernel_size, kernel_size)
    pt, psh = _conv_to_gemm(wt, bt), _conv_to_gemm(wsh, bsh)
    lstm = dict(w=jnp.concatenate([pt["w"], psh["w"]], axis=0),   # (2, Kp, 4h)
                b=jnp.concatenate([pt["b"], psh["b"]], axis=0),   # (2, 1, 4h)
                k=kernel_size, kp=pt["kp"])

    # fc_pred head: c1 Cout padded to >=128, w2 rows zero-padded to match.
    fp_co = _round_up(hidden_size, 128)
    fp1 = _conv_to_gemm(*_he_conv(ks[4], hidden_size, hidden_size, 6, 6),
                        cout_pad=fp_co)
    fp2_w, fp2_b = _he_conv(ks[5], 3, hidden_size, 1, 1)
    fp2 = jnp.pad(fp2_w.reshape(3, hidden_size).T,
                  ((0, fp_co - hidden_size), (0, 0)))

    # fc head: c1 Cout padded to >=128, w2 rows zero-padded to match.
    fc_co = _round_up(hidden_size // 2, 128)
    fc1 = _conv_to_gemm(*_he_conv(ks[6], hidden_size // 2, hidden_size * 2, 6, 6),
                        cout_pad=fc_co)
    fc2_w, fc2_b = _he_conv(ks[7], 3, hidden_size // 2, 1, 1)
    fc2 = jnp.pad(fc2_w.reshape(3, hidden_size // 2).T,
                  ((0, fc_co - hidden_size // 2), (0, 0)))

    return dict(
        hidden_size=hidden_size,
        sq=sq,
        lstm=lstm,
        fc_pred=dict(c1=fp1, w2=fp2, b2=fp2_b),
        fc=dict(c1=fc1, w2=fc2, b2=fc2_b),
    )


# ----------------------------------------------------------------------------
# Demo
# ----------------------------------------------------------------------------
if __name__ == "__main__":
    key = jax.random.PRNGKey(0)
    k_params, k_temp, k_shot = jax.random.split(key, 3)

    HIDDEN = 32       # small stand-in for the default 128
    BS, TS, NC, H, W = 2, 3, 3, 64, 64   # SqueezeNet needs 3-channel RGB input

    params = init_tccnet_params(k_params, hidden_size=HIDDEN, kernel_size=5)
    seq_temp = jax.random.normal(k_temp, (BS, TS, NC, H, W), jnp.float32)
    seq_shot = jax.random.normal(k_shot, (BS, TS, NC, H, W), jnp.float32)

    out, preds_temp, preds_shot = tccnet_forward(params, seq_temp, seq_shot)
    jax.block_until_ready((out, preds_temp, preds_shot))

    assert out.shape == (BS, 3)
    assert preds_temp.shape == (TS, BS, 3)
    assert preds_shot.shape == (TS, BS, 3)
    assert bool(jnp.all(jnp.isfinite(out)))
    assert bool(jnp.all(jnp.isfinite(preds_temp)))
    assert bool(jnp.all(jnp.isfinite(preds_shot)))
    print("KERNEL_OK")
</pallas_src>

<mosaic_0001>
module attributes {stable_mosaic.version = 11 : i64} {
  func.func @_gemm_k1_kernel(%arg0: i32, %arg1: i32, %arg2: i32, %arg3: memref<1x512x128xbf16, #tpu.memory_space<vmem>>, %arg4: memref<1x128x128xbf16, #tpu.memory_space<vmem>>, %arg5: memref<1x1x128xf32, #tpu.memory_space<vmem>>, %arg6: memref<1x512x128xbf16, #tpu.memory_space<vmem>>) attributes {dimension_semantics = [#tpu.dimension_semantics<parallel>, #tpu.dimension_semantics<parallel>, #tpu.dimension_semantics<parallel>], iteration_bounds = array<i64: 2, 12, 1>, scalar_prefetch = 0 : i64, scratch_operands = 0 : i64, tpu.core_type = #tpu.core_type<tc>, window_params = [{transform_indices = @transform_0, window_bounds = array<i64: 1, 512, 128>}, {transform_indices = @transform_1, window_bounds = array<i64: 1, 128, 128>}, {transform_indices = @transform_2, window_bounds = array<i64: 1, 1, 128>}, {transform_indices = @transform_3, window_bounds = array<i64: 1, 512, 128>}]} {
    %c0 = arith.constant 0 : index
    %c0_0 = arith.constant 0 : index
    %c0_1 = arith.constant 0 : index
    %0 = vector.load %arg3[%c0, %c0_0, %c0_1] : memref<1x512x128xbf16, #tpu.memory_space<vmem>>, vector<1x512x128xbf16>
    %1 = vector.shape_cast %0 : vector<1x512x128xbf16> to vector<512x128xbf16>
    %c0_2 = arith.constant 0 : index
    %c0_3 = arith.constant 0 : index
    %c0_4 = arith.constant 0 : index
    %2 = vector.load %arg4[%c0_2, %c0_3, %c0_4] : memref<1x128x128xbf16, #tpu.memory_space<vmem>>, vector<1x128x128xbf16>
    %3 = vector.shape_cast %2 : vector<1x128x128xbf16> to vector<128x128xbf16>
    %cst = arith.constant dense<0.000000e+00> : vector<512x128xf32>
    %4 = tpu.matmul %1, %3, %cst {dimension_numbers = #tpu.dot_dimension_numbers<[1], [0], [0], [1], [0, 0, 1, 1], [], []>} : vector<512x128xbf16>, vector<128x128xbf16>, vector<512x128xf32> -> vector<512x128xf32>
    %c0_5 = arith.constant 0 : index
    %c0_6 = arith.constant 0 : index
    %c0_7 = arith.constant 0 : index
    %5 = vector.load %arg5[%c0_5, %c0_6, %c0_7] : memref<1x1x128xf32, #tpu.memory_space<vmem>>, vector<1x1x128xf32>
    %6 = vector.shape_cast %5 : vector<1x1x128xf32> to vector<1x128xf32>
    %7 = vector.broadcast %6 : vector<1x128xf32> to vector<512x128xf32>
    %8 = arith.addf %4, %7 : vector<512x128xf32>
    %cst_8 = arith.constant 0.000000e+00 : f32
    %9 = vector.broadcast %cst_8 : f32 to vector<512x128xf32>
    %10 = arith.maximumf %8, %9 : vector<512x128xf32>
    %11 = arith.truncf %10 : vector<512x128xf32> to vector<512x128xbf16>
    %c0_9 = arith.constant 0 : index
    %c0_10 = arith.constant 0 : index
    %c0_11 = arith.constant 0 : index
    %12 = vector.load %arg6[%c0_9, %c0_10, %c0_11] : memref<1x512x128xbf16, #tpu.memory_space<vmem>>, vector<1x512x128xbf16>
    %13 = vector.shape_cast %12 : vector<1x512x128xbf16> to vector<512x128xbf16>
    %14 = vector.shape_cast %11 : vector<512x128xbf16> to vector<1x512x128xbf16>
    tpu.vector_store %arg6[%c0_9, %c0_10, %c0_11], %14 {strides = array<i32>} : memref<1x512x128xbf16, #tpu.memory_space<vmem>>, vector<1x512x128xbf16>,
    return
  }
  func.func @transform_0(%arg0: i32, %arg1: i32, %arg2: i32) -> (i32, i32, i32) {
    %c0_i32 = arith.constant 0 : i32
    %c0_i32_0 = arith.constant 0 : i32
    return %arg0, %arg1, %c0_i32 : i32, i32, i32
  }
  func.func @transform_1(%arg0: i32, %arg1: i32, %arg2: i32) -> (i32, i32, i32) {
    %c0_i32 = arith.constant 0 : i32
    %c0_i32_0 = arith.constant 0 : i32
    return %arg0, %c0_i32, %arg2 : i32, i32, i32
  }
  func.func @transform_2(%arg0: i32, %arg1: i32, %arg2: i32) -> (i32, i32, i32) {
    %c0_i32 = arith.constant 0 : i32
    %c0_i32_0 = arith.constant 0 : i32
    return %arg0, %c0_i32, %arg2 : i32, i32, i32
  }
  func.func @transform_3(%arg0: i32, %arg1: i32, %arg2: i32) -> (i32, i32, i32) {
    %c0_i32 = arith.constant 0 : i32
    return %arg0, %arg1, %arg2 : i32, i32, i32
  }
}

</mosaic_0001>

<llo_original>
// kernel: tpu_custom_call.1
$region0: #{tpu_custom_call.1}
  #allocation0 [shape = 'u32[]', space=smem, size = 0x4, offset = 0x4, fixed_abs, tag = 'smem constant byte address 0x4 - core index']
  #allocation1 [shape = 'u32[144,128]{1,0:T(1,128)}', space=vmem, size = 0x12000, scoped, tag = 'internal scratch']
  %s0 = inlined_call_operand.vmem [shape: bf16[2,5766,128], index: 0, kind: input, shape index: {}]
  %s1 = inlined_call_operand.vmem [shape: bf16[2,128,128], index: 1, kind: input, shape index: {}]
  %s2 = inlined_call_operand.vmem [shape: f32[2,1,128], index: 2, kind: input, shape index: {}]
  %s3 = inlined_call_operand.vmem [shape: bf16[2,5766,128], index: 3, kind: output, shape index: {}]
  %s4 = sld [smem:[#allocation0]]
  $region89: #{tpu_custom_call.1} parent=0
    _
  %s6 = ssub.s32 1, %s4
  %s7 = scalar_select 0, %s6, %s4
  $region1: #{tpu_custom_call.1} parent=0
    #allocation2 [shape = 'u8[262144]{0}', space=vmem, size = 0x40000, scoped, tag = 'output window, operand 0']
    loop: start=0, step=1, limit=26
    $region2: #{tpu_custom_call.1} parent=1 // loop_pre_header
      _
    $region3: #{tpu_custom_call.1} parent=1 // loop_header
      %s9 = sphi 0, %s13
      %p10 = scmp.ge.s32.totalorder %s9, 26
      %s16 = sphi 0, %s35
      %s17 = sphi 0, %s31
      %s18 = sphi 0, %s27
      %s19 = sphi 0, %s16
      %s20 = sphi 0, %s17
      %s21 = sphi 0, %s18
      %s22 = sphi 0, %s19
      %s23 = sphi 0, %s20
      %s24 = sphi 0, %s21
      %s40 = sphi 0, %s42
      %s43 = sphi 0, %s40
      %s44 = sphi 0, %s43
      %s60 = sphi 0, %s44
      %s68 = sphi 0, %s70
      %s71 = sphi 0, %s68
      %s72 = sphi 0, %s71
      %s88 = sphi 0, %s72
      %s96 = sphi 0, %s98
      %s99 = sphi 0, %s96
      %s100 = sphi 0, %s99
      %s116 = sphi 0, %s100
      %s126 = sphi 0, %s128
      %s129 = sphi 0, %s126
      %s130 = sphi 0, %s129
      %s146 = sphi 0, %s130
    $region4: #{tpu_custom_call.1} parent=1 // loop_header_branch
      %12 = sbr.rel (%p10) target = $region8
    $region5: #{tpu_custom_call.1} parent=1 // loop_body
      %s14 = ssub.s32 %s9, 1
      %s15 = ssub.s32 %s9, 2
      %s25 = sadd.s32 1, %s18
      %p26 = scmp.ge.s32.totalorder %s25, 1
      %s27 = scalar_select %p26, 0, %s25
      %s28 = sadd.s32 1, %s17
      %s29 = scalar_select %p26, %s28, %s17
      %p30 = scmp.ge.s32.totalorder %s29, 12
      %s31 = scalar_select %p30, 0, %s29
      %s32 = sadd.s32 1, %s16
      %s33 = scalar_select %p30, %s32, %s16
      %p34 = scmp.ge.s32.totalorder %s33, 2
      %s35 = scalar_select %p34, 0, %s33
      %s36 = ssub.s32 %s16, %s35
      %s37 = ssub.s32 %s17, %s31
      %s38 = sor.u32 %s36, %s37
      %p39 = scmp.eq.s32.totalorder %s38, 0
      %s41 = sadd.s32 %s40, 1
      %s42 = scalar_select %p39, %s40, %s41
      %p45 = pneg %p39
      %p46 = scmp.eq.s32.totalorder %s9, 23
      %p47 = por %p45, %p46
      %p48 = scmp.ne.s32.totalorder %s40, %s43
      %p49 = scmp.eq.s32.totalorder %s9, 0
      %p50 = por %p48, %p49
      %p51 = scmp.ne.s32.totalorder %s40, %s43
      %p52 = scmp.eq.s32.totalorder %s14, 23
      %p53 = por %p51, %p52
      %p54 = scmp.ne.s32.totalorder %s43, %s44
      %p55 = scmp.eq.s32.totalorder %s14, 0
      %p56 = por %p54, %p55
      %p57 = scmp.ne.s32.totalorder %s43, %s44
      %p58 = scmp.eq.s32.totalorder %s15, 23
      %p59 = por %p57, %p58
      %p61 = scmp.ne.s32.totalorder %s44, %s60
      %p62 = scmp.eq.s32.totalorder %s15, 0
      %p63 = por %p61, %p62
      %s64 = ssub.s32 %s16, %s35
      %s65 = ssub.s32 %s18, %s27
      %s66 = sor.u32 %s64, %s65
      %p67 = scmp.eq.s32.totalorder %s66, 0
      %s69 = sadd.s32 %s68, 1
      %s70 = scalar_select %p67, %s68, %s69
      %p73 = pneg %p67
      %p74 = scmp.eq.s32.totalorder %s9, 23
      %p75 = por %p73, %p74
      %p76 = scmp.ne.s32.totalorder %s68, %s71
      %p77 = scmp.eq.s32.totalorder %s9, 0
      %p78 = por %p76, %p77
      %p79 = scmp.ne.s32.totalorder %s68, %s71
      %p80 = scmp.eq.s32.totalorder %s14, 23
      %p81 = por %p79, %p80
      %p82 = scmp.ne.s32.totalorder %s71, %s72
      %p83 = scmp.eq.s32.totalorder %s14, 0
      %p84 = por %p82, %p83
      %p85 = scmp.ne.s32.totalorder %s71, %s72
      %p86 = scmp.eq.s32.totalorder %s15, 23
      %p87 = por %p85, %p86
      %p89 = scmp.ne.s32.totalorder %s72, %s88
      %p90 = scmp.eq.s32.totalorder %s15, 0
      %p91 = por %p89, %p90
      %s92 = ssub.s32 %s16, %s35
      %s93 = ssub.s32 %s18, %s27
      %s94 = sor.u32 %s92, %s93
      %p95 = scmp.eq.s32.totalorder %s94, 0
      %s97 = sadd.s32 %s96, 1
      %s98 = scalar_select %p95, %s96, %s97
      %p101 = pneg %p95
      %p102 = scmp.eq.s32.totalorder %s9, 23
      %p103 = por %p101, %p102
      %p104 = scmp.ne.s32.totalorder %s96, %s99
      %p105 = scmp.eq.s32.totalorder %s9, 0
      %p106 = por %p104, %p105
      %p107 = scmp.ne.s32.totalorder %s96, %s99
      %p108 = scmp.eq.s32.totalorder %s14, 23
      %p109 = por %p107, %p108
      %p110 = scmp.ne.s32.totalorder %s99, %s100
      %p111 = scmp.eq.s32.totalorder %s14, 0
      %p112 = por %p110, %p111
      %p113 = scmp.ne.s32.totalorder %s99, %s100
      %p114 = scmp.eq.s32.totalorder %s15, 23
      %p115 = por %p113, %p114
      %p117 = scmp.ne.s32.totalorder %s100, %s116
      %p118 = scmp.eq.s32.totalorder %s15, 0
      %p119 = por %p117, %p118
      %s120 = ssub.s32 %s16, %s35
      %s121 = ssub.s32 %s17, %s31
      %s122 = sor.u32 %s120, %s121
      %s123 = ssub.s32 %s18, %s27
      %s124 = sor.u32 %s122, %s123
      %p125 = scmp.eq.s32.totalorder %s124, 0
      %s127 = sadd.s32 %s126, 1
      %s128 = scalar_select %p125, %s126, %s127
      %p131 = pneg %p125
      %p132 = scmp.eq.s32.totalorder %s9, 23
      %p133 = por %p131, %p132
      %p134 = scmp.ne.s32.totalorder %s126, %s129
      %p135 = scmp.eq.s32.totalorder %s9, 0
      %p136 = por %p134, %p135
      %p137 = scmp.ne.s32.totalorder %s126, %s129
      %p138 = scmp.eq.s32.totalorder %s14, 23
      %p139 = por %p137, %p138
      %p140 = scmp.ne.s32.totalorder %s129, %s130
      %p141 = scmp.eq.s32.totalorder %s14, 0
      %p142 = por %p140, %p141
      %p143 = scmp.ne.s32.totalorder %s129, %s130
      %p144 = scmp.eq.s32.totalorder %s15, 23
      %p145 = por %p143, %p144
      %p147 = scmp.ne.s32.totalorder %s130, %s146
      %p148 = scmp.eq.s32.totalorder %s15, 0
      %p149 = por %p147, %p148
      %p150 = scmp.le.s32.totalorder 1, %s9
      %p151 = scmp.lt.s32.totalorder %s9, 25
      %p152 = pnand %p150, %p151
      %p153 = pneg %p152
      // Predicated region
      $region9: #{tpu_custom_call.1} parent=5 // pred_check
        _
      $region10: #{tpu_custom_call.1} parent=5 // pred_check_branch
        %155 = sbr.rel (%p152) target = $region12
      $region11: #{tpu_custom_call.1} parent=5 // pred_region
        %s156 = ssub.s32 %s9, 1
      $region12: #{tpu_custom_call.1} parent=5 // pred_fallthru
        _
      %p157 = scmp.lt.s32.totalorder %s9, 24
      // Predicated region
      $region13: #{tpu_custom_call.1} parent=5 // pred_check
        %p158 = pneg %p157
      $region14: #{tpu_custom_call.1} parent=5 // pred_check_branch
        %160 = sbr.rel (%p158) target = $region16
      $region15: #{tpu_custom_call.1} parent=5 // pred_region
        // Predicated region
        $region17: #{tpu_custom_call.1} parent=15 // pred_check
          %p161 = pneg %p50
        $region18: #{tpu_custom_call.1} parent=15 // pred_check_branch
          %163 = sbr.rel (%p161) target = $region20
        $region19: #{tpu_custom_call.1} parent=15 // pred_region
          %s164 = smul.u32 64, %s17
          %s165 = ssub.s32 721, %s164
          %p166 = scmp.lt.s32.totalorder %s165, 64
          %s167 = scalar_select %p166, %s165, 64
          %s168 = smul.u32 64, %s167
          %p169 = scmp.lt.s32.totalorder %s16, 1
          %s170 = scalar_select %p169, %s16, 1
          %p171 = scmp.lt.s32.totalorder %s164, 720
          %s172 = scalar_select %p171, %s164, 720
          %s173 = smul.addr %s170, 721
          %s174 = sadd.s32 %s172, %s173
          %s175 = smul.addr %s174, 4
          %s176 = scalar_lea.vmem %s0, %s175
          %s177 = smul.u32 64, %s17
          %s178 = ssub.s32 721, %s177
          %p179 = scmp.lt.s32.totalorder %s178, 64
          %s180 = scalar_select %p179, %s178, 64
          %s181 = smul.u32 64, %s180
        $region20: #{tpu_custom_call.1} parent=15 // pred_fallthru
          _
        // Predicated region
        $region21: #{tpu_custom_call.1} parent=15 // pred_check
          %p182 = pneg %p78
        $region22: #{tpu_custom_call.1} parent=15 // pred_check_branch
          %184 = sbr.rel (%p182) target = $region24
        $region23: #{tpu_custom_call.1} parent=15 // pred_region
          %p185 = scmp.lt.s32.totalorder %s16, 1
          %s186 = scalar_select %p185, %s16, 1
          %p187 = scmp.lt.s32.totalorder %s18, 0
          %s188 = scalar_select %p187, %s18, 0
          %s189 = smul.addr %s186, 16
          %s190 = sadd.s32 %s188, %s189
          %s191 = smul.addr %s190, 4
          %s192 = scalar_lea.vmem %s1, %s191
        $region24: #{tpu_custom_call.1} parent=15 // pred_fallthru
          _
        // Predicated region
        $region25: #{tpu_custom_call.1} parent=15 // pred_check
          %p193 = pneg %p106
        $region26: #{tpu_custom_call.1} parent=15 // pred_check_branch
          %195 = sbr.rel (%p193) target = $region28
        $region27: #{tpu_custom_call.1} parent=15 // pred_region
          %p196 = scmp.lt.s32.totalorder %s16, 1
          %s197 = scalar_select %p196, %s16, 1
          %p198 = scmp.lt.s32.totalorder %s18, 0
          %s199 = scalar_select %p198, %s18, 0
          %s200 = sadd.s32 %s199, %s197
          %s201 = scalar_lea.vmem %s2, %s200
        $region28: #{tpu_custom_call.1} parent=15 // pred_fallthru
          _
      $region16: #{tpu_custom_call.1} parent=5 // pred_fallthru
        _
      %p202 = scmp.le.s32.totalorder 1, %s9
      %p203 = scmp.lt.s32.totalorder %s9, 25
      %p204 = pnand %p202, %p203
      %p205 = pneg %p204
      // Predicated region
      $region29: #{tpu_custom_call.1} parent=5 // pred_check
        _
      $region30: #{tpu_custom_call.1} parent=5 // pred_check_branch
        %207 = sbr.rel (%p204) target = $region32
      $region31: #{tpu_custom_call.1} parent=5 // pred_region
        %s208 = ssub.s32 %s9, 1
        %s209 = smul.u32 64, %s20
        %s210 = ssub.s32 721, %s209
        %p211 = scmp.lt.s32.totalorder %s210, 64
        %s212 = scalar_select %p211, %s210, 64
        %s213 = smul.u32 64, %s212
        %p214 = scmp.lt.s32.totalorder %s19, 1
        %s215 = scalar_select %p214, %s19, 1
        %p216 = scmp.lt.s32.totalorder %s209, 720
        %s217 = scalar_select %p216, %s209, 720
        %s218 = smul.addr %s215, 721
        %s219 = sadd.s32 %s217, %s218
        %s220 = smul.addr %s219, 4
        %s221 = scalar_lea.vmem %s0, %s220
        %p222 = pneg %p56
        %p223 = pneg %p53
        %p224 = scmp.lt.s32.totalorder %s19, 1
        %s225 = scalar_select %p224, %s19, 1
        %p226 = scmp.lt.s32.totalorder %s21, 0
        %s227 = scalar_select %p226, %s21, 0
        %s228 = smul.addr %s225, 16
        %s229 = sadd.s32 %s227, %s228
        %s230 = smul.addr %s229, 4
        %s231 = scalar_lea.vmem %s1, %s230
        %p232 = pneg %p84
        %p233 = pneg %p81
        %p234 = scmp.lt.s32.totalorder %s19, 1
        %s235 = scalar_select %p234, %s19, 1
        %p236 = scmp.lt.s32.totalorder %s21, 0
        %s237 = scalar_select %p236, %s21, 0
        %s238 = sadd.s32 %s237, %s235
        %s239 = scalar_lea.vmem %s2, %s238
        %p240 = pneg %p112
        %p241 = pneg %p109
        %p242 = pneg %p142
        %p243 = pneg %p139
        %s244 = sand.u32 %s129, 1
        %s245 = sand.u32 %s129, 1
        %s246 = smul.addr %s245, 256
        %s247 = scalar_lea.vmem [#allocation2], %s246
        %s248 = smul.u32 64, %s20
        %s249 = ssub.s32 721, %s248
        %p250 = scmp.lt.s32.totalorder %s249, 64
        %s251 = scalar_select %p250, %s249, 64
        %s252 = smul.u32 64, %s251
        %p253 = scmp.lt.s32.totalorder %s19, 1
        %s254 = scalar_select %p253, %s19, 1
        %p255 = scmp.lt.s32.totalorder %s248, 720
        %s256 = scalar_select %p255, %s248, 720
        %s257 = smul.addr %s254, 721
        %s258 = sadd.s32 %s256, %s257
        %s259 = smul.addr %s258, 4
        %s260 = scalar_lea.vmem %s0, %s259
        %s261 = smul.u32 64, %s20
        %s262 = ssub.s32 721, %s261
        %p263 = scmp.lt.s32.totalorder %s262, 64
        %s264 = scalar_select %p263, %s262, 64
        %s265 = smul.u32 64, %s264
        %p266 = scmp.lt.s32.totalorder %s19, 1
        %s267 = scalar_select %p266, %s19, 1
        %p268 = scmp.lt.s32.totalorder %s21, 0
        %s269 = scalar_select %p268, %s21, 0
        %s270 = smul.addr %s267, 16
        %s271 = sadd.s32 %s269, %s270
        %s272 = smul.addr %s271, 4
        %s273 = scalar_lea.vmem %s1, %s272
        %p274 = scmp.lt.s32.totalorder %s19, 1
        %s275 = scalar_select %p274, %s19, 1
        %p276 = scmp.lt.s32.totalorder %s21, 0
        %s277 = scalar_select %p276, %s21, 0
        %s278 = sadd.s32 %s277, %s275
        %s279 = scalar_lea.vmem %s2, %s278
        %s280 = smul.u32 64, %s20
        %s281 = ssub.s32 721, %s280
        %p282 = scmp.lt.s32.totalorder %s281, 64
        %s283 = scalar_select %p282, %s281, 64
        %s284 = smul.u32 64, %s283
        %v286 = vld [vmem:[%s260] sm:$0xf]
        %v287 = vld [vmem:[%s260 + $0x4] sm:$0xf]
        %v288 = vld [vmem:[%s260 + $0x8] sm:$0xf]
        %v289 = vld [vmem:[%s260 + $0xc] sm:$0xf]
        %v290 = vld [vmem:[%s260 + $0x10] sm:$0xf]
        %v291 = vld [vmem:[%s260 + $0x14] sm:$0xf]
        %v292 = vld [vmem:[%s260 + $0x18] sm:$0xf]
        %v293 = vld [vmem:[%s260 + $0x1c] sm:$0xf]
        %v294 = vld [vmem:[%s260 + $0x20] sm:$0xf]
        %v295 = vld [vmem:[%s260 + $0x24] sm:$0xf]
        %v296 = vld [vmem:[%s260 + $0x28] sm:$0xf]
        %v297 = vld [vmem:[%s260 + $0x2c] sm:$0xf]
        %v298 = vld [vmem:[%s260 + $0x30] sm:$0xf]
        %v299 = vld [vmem:[%s260 + $0x34] sm:$0xf]
        %v300 = vld [vmem:[%s260 + $0x38] sm:$0xf]
        %v301 = vld [vmem:[%s260 + $0x3c] sm:$0xf]
        %v302 = vld [vmem:[%s260 + $0x40] sm:$0xf]
        %v303 = vld [vmem:[%s260 + $0x44] sm:$0xf]
        %v304 = vld [vmem:[%s260 + $0x48] sm:$0xf]
        %v305 = vld [vmem:[%s260 + $0x4c] sm:$0xf]
        %v306 = vld [vmem:[%s260 + $0x50] sm:$0xf]
        %v307 = vld [vmem:[%s260 + $0x54] sm:$0xf]
        %v308 = vld [vmem:[%s260 + $0x58] sm:$0xf]
        %v309 = vld [vmem:[%s260 + $0x5c] sm:$0xf]
        %v310 = vld [vmem:[%s260 + $0x60] sm:$0xf]
        %v311 = vld [vmem:[%s260 + $0x64] sm:$0xf]
        %v312 = vld [vmem:[%s260 + $0x68] sm:$0xf]
        %v313 = vld [vmem:[%s260 + $0x6c] sm:$0xf]
        %v314 = vld [vmem:[%s260 + $0x70] sm:$0xf]
        %v315 = vld [vmem:[%s260 + $0x74] sm:$0xf]
        %v316 = vld [vmem:[%s260 + $0x78] sm:$0xf]
        %v317 = vld [vmem:[%s260 + $0x7c] sm:$0xf]
        %v318 = vld [vmem:[%s260 + $0x80] sm:$0xf]
        %v319 = vld [vmem:[%s260 + $0x84] sm:$0xf]
        %v320 = vld [vmem:[%s260 + $0x88] sm:$0xf]
        %v321 = vld [vmem:[%s260 + $0x8c] sm:$0xf]
        %v322 = vld [vmem:[%s260 + $0x90] sm:$0xf]
        %v323 = vld [vmem:[%s260 + $0x94] sm:$0xf]
        %v324 = vld [vmem:[%s260 + $0x98] sm:$0xf]
        %v325 = vld [vmem:[%s260 + $0x9c] sm:$0xf]
        %v326 = vld [vmem:[%s260 + $0xa0] sm:$0xf]
        %v327 = vld [vmem:[%s260 + $0xa4] sm:$0xf]
        %v328 = vld [vmem:[%s260 + $0xa8] sm:$0xf]
        %v329 = vld [vmem:[%s260 + $0xac] sm:$0xf]
        %v330 = vld [vmem:[%s260 + $0xb0] sm:$0xf]
        %v331 = vld [vmem:[%s260 + $0xb4] sm:$0xf]
        %v332 = vld [vmem:[%s260 + $0xb8] sm:$0xf]
        %v333 = vld [vmem:[%s260 + $0xbc] sm:$0xf]
        %v334 = vld [vmem:[%s260 + $0xc0] sm:$0xf]
        %v335 = vld [vmem:[%s260 + $0xc4] sm:$0xf]
        %v336 = vld [vmem:[%s260 + $0xc8] sm:$0xf]
        %v337 = vld [vmem:[%s260 + $0xcc] sm:$0xf]
        %v338 = vld [vmem:[%s260 + $0xd0] sm:$0xf]
        %v339 = vld [vmem:[%s260 + $0xd4] sm:$0xf]
        %v340 = vld [vmem:[%s260 + $0xd8] sm:$0xf]
        %v341 = vld [vmem:[%s260 + $0xdc] sm:$0xf]
        %v342 = vld [vmem:[%s260 + $0xe0] sm:$0xf]
        %v343 = vld [vmem:[%s260 + $0xe4] sm:$0xf]
        %v344 = vld [vmem:[%s260 + $0xe8] sm:$0xf]
        %v345 = vld [vmem:[%s260 + $0xec] sm:$0xf]
        %v346 = vld [vmem:[%s260 + $0xf0] sm:$0xf]
        %v347 = vld [vmem:[%s260 + $0xf4] sm:$0xf]
        %v348 = vld [vmem:[%s260 + $0xf8] sm:$0xf]
        %v349 = vld [vmem:[%s260 + $0xfc] sm:$0xf]
        %v350 = vld [vmem:[%s273] sm:$0xf]
        %v351 = vld [vmem:[%s273 + $0x4] sm:$0xf]
        %v352 = vld [vmem:[%s273 + $0x8] sm:$0xf]
        %v353 = vld [vmem:[%s273 + $0xc] sm:$0xf]
        %v354 = vld [vmem:[%s273 + $0x10] sm:$0xf]
        %v355 = vld [vmem:[%s273 + $0x14] sm:$0xf]
        %v356 = vld [vmem:[%s273 + $0x18] sm:$0xf]
        %v357 = vld [vmem:[%s273 + $0x1c] sm:$0xf]
        %v358 = vld [vmem:[%s273 + $0x20] sm:$0xf]
        %v359 = vld [vmem:[%s273 + $0x24] sm:$0xf]
        %v360 = vld [vmem:[%s273 + $0x28] sm:$0xf]
        %v361 = vld [vmem:[%s273 + $0x2c] sm:$0xf]
        %v362 = vld [vmem:[%s273 + $0x30] sm:$0xf]
        %v363 = vld [vmem:[%s273 + $0x34] sm:$0xf]
        %v364 = vld [vmem:[%s273 + $0x38] sm:$0xf]
        %v365 = vld [vmem:[%s273 + $0x3c] sm:$0xf]
        %v366 = vld [vmem:[%s279] sm:$0x1]
        %v368 = vlaneseq
        %v369 = vshrl.u32 %v368, 7
        %v370 = vsub.s32 0, %v369
        %v371 = vrot.slane %v366, %v370
        %v437 = vunpack.c.l.b16 %v286
        %v438 = vunpack.c.l.b16 %v287
        %v439 = vunpack.c.l.b16 %v288
        %v440 = vunpack.c.l.b16 %v289
        %v441 = vunpack.c.l.b16 %v290
        %v442 = vunpack.c.l.b16 %v291
        %v443 = vunpack.c.l.b16 %v292
        %v444 = vunpack.c.l.b16 %v293
        %v445 = vunpack.c.l.b16 %v294
        %v446 = vunpack.c.l.b16 %v295
        %v447 = vunpack.c.l.b16 %v296
        %v448 = vunpack.c.l.b16 %v297
        %v449 = vunpack.c.l.b16 %v298
        %v450 = vunpack.c.l.b16 %v299
        %v451 = vunpack.c.l.b16 %v300
        %v452 = vunpack.c.l.b16 %v301
        %v453 = vunpack.c.l.b16 %v302
        %v454 = vunpack.c.l.b16 %v303
        %v455 = vunpack.c.l.b16 %v304
        %v456 = vunpack.c.l.b16 %v305
        %v457 = vunpack.c.l.b16 %v306
        %v458 = vunpack.c.l.b16 %v307
        %v459 = vunpack.c.l.b16 %v308
        %v460 = vunpack.c.l.b16 %v309
        %v461 = vunpack.c.l.b16 %v310
        %v462 = vunpack.c.l.b16 %v311
        %v463 = vunpack.c.l.b16 %v312
        %v464 = vunpack.c.l.b16 %v313
        %v465 = vunpack.c.l.b16 %v314
        %v466 = vunpack.c.l.b16 %v315
        %v467 = vunpack.c.l.b16 %v316
        %v468 = vunpack.c.l.b16 %v317
        %v469 = vunpack.c.l.b16 %v318
        %v470 = vunpack.c.l.b16 %v319
        %v471 = vunpack.c.l.b16 %v320
        %v472 = vunpack.c.l.b16 %v321
        %v473 = vunpack.c.l.b16 %v322
        %v474 = vunpack.c.l.b16 %v323
        %v475 = vunpack.c.l.b16 %v324
        %v476 = vunpack.c.l.b16 %v325
        %v477 = vunpack.c.l.b16 %v326
        %v478 = vunpack.c.l.b16 %v327
        %v479 = vunpack.c.l.b16 %v328
        %v480 = vunpack.c.l.b16 %v329
        %v481 = vunpack.c.l.b16 %v330
        %v482 = vunpack.c.l.b16 %v331
        %v483 = vunpack.c.l.b16 %v332
        %v484 = vunpack.c.l.b16 %v333
        %v485 = vunpack.c.l.b16 %v334
        %v486 = vunpack.c.l.b16 %v335
        %v487 = vunpack.c.l.b16 %v336
        %v488 = vunpack.c.l.b16 %v337
        %v489 = vunpack.c.l.b16 %v338
        %v490 = vunpack.c.l.b16 %v339
        %v491 = vunpack.c.l.b16 %v340
        %v492 = vunpack.c.l.b16 %v341
        %v493 = vunpack.c.l.b16 %v342
        %v494 = vunpack.c.l.b16 %v343
        %v495 = vunpack.c.l.b16 %v344
        %v496 = vunpack.c.l.b16 %v345
        %v497 = vunpack.c.l.b16 %v346
        %v498 = vunpack.c.l.b16 %v347
        %v499 = vunpack.c.l.b16 %v348
        %v500 = vunpack.c.l.b16 %v349
        %v501 = vpack.c.b16 %v438, %v437
        %v502 = vpack.c.b16 %v440, %v439
        %v503 = vpack.c.b16 %v442, %v441
        %v504 = vpack.c.b16 %v444, %v443
        %v505 = vpack.c.b16 %v446, %v445
        %v506 = vpack.c.b16 %v448, %v447
        %v507 = vpack.c.b16 %v450, %v449
        %v508 = vpack.c.b16 %v452, %v451
        %v509 = vpack.c.b16 %v454, %v453
        %v510 = vpack.c.b16 %v456, %v455
        %v511 = vpack.c.b16 %v458, %v457
        %v512 = vpack.c.b16 %v460, %v459
        %v513 = vpack.c.b16 %v462, %v461
        %v514 = vpack.c.b16 %v464, %v463
        %v515 = vpack.c.b16 %v466, %v465
        %v516 = vpack.c.b16 %v468, %v467
        %v517 = vpack.c.b16 %v470, %v469
        %v518 = vpack.c.b16 %v472, %v471
        %v519 = vpack.c.b16 %v474, %v473
        %v520 = vpack.c.b16 %v476, %v475
        %v521 = vpack.c.b16 %v478, %v477
        %v522 = vpack.c.b16 %v480, %v479
        %v523 = vpack.c.b16 %v482, %v481
        %v524 = vpack.c.b16 %v484, %v483
        %v525 = vpack.c.b16 %v486, %v485
        %v526 = vpack.c.b16 %v488, %v487
        %v527 = vpack.c.b16 %v490, %v489
        %v528 = vpack.c.b16 %v492, %v491
        %v529 = vpack.c.b16 %v494, %v493
        %v530 = vpack.c.b16 %v496, %v495
        %v531 = vpack.c.b16 %v498, %v497
        %v532 = vpack.c.b16 %v500, %v499
        %v581 = vunpack.c.l.b16 %v350
        %v582 = vunpack.c.l.b16 %v351
        %v583 = vunpack.c.l.b16 %v352
        %v584 = vunpack.c.l.b16 %v353
        %v585 = vunpack.c.l.b16 %v354
        %v586 = vunpack.c.l.b16 %v355
        %v587 = vunpack.c.l.b16 %v356
        %v588 = vunpack.c.l.b16 %v357
        %v589 = vunpack.c.l.b16 %v358
        %v590 = vunpack.c.l.b16 %v359
        %v591 = vunpack.c.l.b16 %v360
        %v592 = vunpack.c.l.b16 %v361
        %v593 = vunpack.c.l.b16 %v362
        %v594 = vunpack.c.l.b16 %v363
        %v595 = vunpack.c.l.b16 %v364
        %v596 = vunpack.c.l.b16 %v365
        %v597 = vpack.c.b16 %v582, %v581
        %v598 = vpack.c.b16 %v584, %v583
        %v599 = vpack.c.b16 %v586, %v585
        %v600 = vpack.c.b16 %v588, %v587
        %v601 = vpack.c.b16 %v590, %v589
        %v602 = vpack.c.b16 %v592, %v591
        %v603 = vpack.c.b16 %v594, %v593
        %v604 = vpack.c.b16 %v596, %v595
        %613 = vmatprep.subr.bf16.mxu0 0
        %614 = vmatpush1.bf16.msra.mxu0 %v604
        %615 = vmatprep.subr.bf16.mxu0 0
        %616 = vmatpush1.bf16.msra.mxu0 %v603
        %617 = vmatprep.subr.bf16.mxu0 0
        %618 = vmatpush1.bf16.msra.mxu0 %v602
        %619 = vmatprep.subr.bf16.mxu0 0
        %620 = vmatpush1.bf16.msra.mxu0 %v601
        %621 = vmatprep.subr.bf16.mxu0 0
        %622 = vmatpush1.bf16.msra.mxu0 %v600
        %623 = vmatprep.subr.bf16.mxu0 0
        %624 = vmatpush1.bf16.msra.mxu0 %v599
        %625 = vmatprep.subr.bf16.mxu0 0
        %626 = vmatpush1.bf16.msra.mxu0 %v598
        %627 = vmatprep.subr.bf16.mxu0 0
        %628 = vmatpush1.bf16.msra.mxu0 %v597
        %629 = vmatprep.subr.bf16.mxu0 0
        %630 = vmatpush2.bf16.msra.mxu0 0
        %631 = vmatprep.subr.bf16.mxu0 0
        %632 = vmatpush2.bf16.msra.mxu0 0
        %633 = vmatprep.subr.bf16.mxu0 0
        %634 = vmatpush2.bf16.msra.mxu0 0
        %635 = vmatprep.subr.bf16.mxu0 0
        %636 = vmatpush2.bf16.msra.mxu0 0
        %637 = vmatprep.subr.bf16.mxu0 0
        %638 = vmatpush2.bf16.msra.mxu0 0
        %639 = vmatprep.subr.bf16.mxu0 0
        %640 = vmatpush2.bf16.msra.mxu0 0
        %641 = vmatprep.subr.bf16.mxu0 0
        %642 = vmatpush2.bf16.msra.mxu0 0
        %643 = vmatprep.subr.bf16.mxu0 0
        %644 = vmatpush2.bf16.msra.mxu0 0
        %645 = vmatprep.mubr.bf16.mxu0 0
        %646 = vmatmul.mubr.bf16.gmra.mxu0 %v501
        %v647 = vpop.f32.mrf.mxu0
        %v648 = vadd.f32 %v371, %v647
        %v649 = vpop.f32.mrf.mxu0
        %v650 = vpop.f32.mrf.mxu0
        %v651 = vadd.f32 %v371, %v650
        %v652 = vpop.f32.mrf.mxu0
        %653 = vmatprep.mubr.bf16.mxu0 0
        %654 = vmatmul.mubr.bf16.gmra.mxu0 %v502
        %v655 = vpop.f32.mrf.mxu0
        %v656 = vadd.f32 %v371, %v655
        %v657 = vpop.f32.mrf.mxu0
        %v658 = vpop.f32.mrf.mxu0
        %v659 = vadd.f32 %v371, %v658
        %v660 = vpop.f32.mrf.mxu0
        %661 = vmatprep.mubr.bf16.mxu0 0
        %662 = vmatmul.mubr.bf16.gmra.mxu0 %v503
        %v663 = vpop.f32.mrf.mxu0
        %v664 = vadd.f32 %v371, %v663
        %v665 = vpop.f32.mrf.mxu0
        %v666 = vpop.f32.mrf.mxu0
        %v667 = vadd.f32 %v371, %v666
        %v668 = vpop.f32.mrf.mxu0
        %669 = vmatprep.mubr.bf16.mxu0 0
        %670 = vmatmul.mubr.bf16.gmra.mxu0 %v504
        %v671 = vpop.f32.mrf.mxu0
        %v672 = vadd.f32 %v371, %v671
        %v673 = vpop.f32.mrf.mxu0
        %v674 = vpop.f32.mrf.mxu0
        %v675 = vadd.f32 %v371, %v674
        %v676 = vpop.f32.mrf.mxu0
        %677 = vmatprep.mubr.bf16.mxu0 0
        %678 = vmatmul.mubr.bf16.gmra.mxu0 %v505
        %v679 = vpop.f32.mrf.mxu0
        %v680 = vadd.f32 %v371, %v679
        %v681 = vpop.f32.mrf.mxu0
        %v682 = vpop.f32.mrf.mxu0
        %v683 = vadd.f32 %v371, %v682
        %v684 = vpop.f32.mrf.mxu0
        %685 = vmatprep.mubr.bf16.mxu0 0
        %686 = vmatmul.mubr.bf16.gmra.mxu0 %v506
        %v687 = vpop.f32.mrf.mxu0
        %v688 = vadd.f32 %v371, %v687
        %v689 = vpop.f32.mrf.mxu0
        %v690 = vpop.f32.mrf.mxu0
        %v691 = vadd.f32 %v371, %v690
        %v692 = vpop.f32.mrf.mxu0
        %693 = vmatprep.mubr.bf16.mxu0 0
        %694 = vmatmul.mubr.bf16.gmra.mxu0 %v507
        %v695 = vpop.f32.mrf.mxu0
        %v696 = vadd.f32 %v371, %v695
        %v697 = vpop.f32.mrf.mxu0
        %v698 = vpop.f32.mrf.mxu0
        %v699 = vadd.f32 %v371, %v698
        %v700 = vpop.f32.mrf.mxu0
        %701 = vmatprep.mubr.bf16.mxu0 0
        %702 = vmatmul.mubr.bf16.gmra.mxu0 %v508
        %v703 = vpop.f32.mrf.mxu0
        %v704 = vadd.f32 %v371, %v703
        %v705 = vpop.f32.mrf.mxu0
        %v706 = vpop.f32.mrf.mxu0
        %v707 = vadd.f32 %v371, %v706
        %v708 = vpop.f32.mrf.mxu0
        %709 = vmatprep.mubr.bf16.mxu0 0
        %710 = vmatmul.mubr.bf16.gmra.mxu0 %v509
        %v711 = vpop.f32.mrf.mxu0
        %v712 = vadd.f32 %v371, %v711
        %v713 = vpop.f32.mrf.mxu0
        %v714 = vpop.f32.mrf.mxu0
        %v715 = vadd.f32 %v371, %v714
        %v716 = vpop.f32.mrf.mxu0
        %717 = vmatprep.mubr.bf16.mxu0 0
        %718 = vmatmul.mubr.bf16.gmra.mxu0 %v510
        %v719 = vpop.f32.mrf.mxu0
        %v720 = vadd.f32 %v371, %v719
        %v721 = vpop.f32.mrf.mxu0
        %v722 = vpop.f32.mrf.mxu0
        %v723 = vadd.f32 %v371, %v722
        %v724 = vpop.f32.mrf.mxu0
        %725 = vmatprep.mubr.bf16.mxu0 0
        %726 = vmatmul.mubr.bf16.gmra.mxu0 %v511
        %v727 = vpop.f32.mrf.mxu0
        %v728 = vadd.f32 %v371, %v727
        %v729 = vpop.f32.mrf.mxu0
        %v730 = vpop.f32.mrf.mxu0
        %v731 = vadd.f32 %v371, %v730
        %v732 = vpop.f32.mrf.mxu0
        %733 = vmatprep.mubr.bf16.mxu0 0
        %734 = vmatmul.mubr.bf16.gmra.mxu0 %v512
        %v735 = vpop.f32.mrf.mxu0
        %v736 = vadd.f32 %v371, %v735
        %v737 = vpop.f32.mrf.mxu0
        %v738 = vpop.f32.mrf.mxu0
        %v739 = vadd.f32 %v371, %v738
        %v740 = vpop.f32.mrf.mxu0
        %741 = vmatprep.mubr.bf16.mxu0 0
        %742 = vmatmul.mubr.bf16.gmra.mxu0 %v513
        %v743 = vpop.f32.mrf.mxu0
        %v744 = vadd.f32 %v371, %v743
        %v745 = vpop.f32.mrf.mxu0
        %v746 = vpop.f32.mrf.mxu0
        %v747 = vadd.f32 %v371, %v746
        %v748 = vpop.f32.mrf.mxu0
        %749 = vmatprep.mubr.bf16.mxu0 0
        %750 = vmatmul.mubr.bf16.gmra.mxu0 %v514
        %v751 = vpop.f32.mrf.mxu0
        %v752 = vadd.f32 %v371, %v751
        %v753 = vpop.f32.mrf.mxu0
        %v754 = vpop.f32.mrf.mxu0
        %v755 = vadd.f32 %v371, %v754
        %v756 = vpop.f32.mrf.mxu0
        %757 = vmatprep.mubr.bf16.mxu0 0
        %758 = vmatmul.mubr.bf16.gmra.mxu0 %v515
        %v759 = vpop.f32.mrf.mxu0
        %v760 = vadd.f32 %v371, %v759
        %v761 = vpop.f32.mrf.mxu0
        %v762 = vpop.f32.mrf.mxu0
        %v763 = vadd.f32 %v371, %v762
        %v764 = vpop.f32.mrf.mxu0
        %765 = vmatprep.mubr.bf16.mxu0 0
        %766 = vmatmul.mubr.bf16.gmra.mxu0 %v516
        %v767 = vpop.f32.mrf.mxu0
        %v768 = vadd.f32 %v371, %v767
        %v769 = vpop.f32.mrf.mxu0
        %v770 = vpop.f32.mrf.mxu0
        %v771 = vadd.f32 %v371, %v770
        %v772 = vpop.f32.mrf.mxu0
        %773 = vmatprep.mubr.bf16.mxu0 0
        %774 = vmatmul.mubr.bf16.gmra.mxu0 %v517
        %v775 = vpop.f32.mrf.mxu0
        %v776 = vadd.f32 %v371, %v775
        %v777 = vpop.f32.mrf.mxu0
        %v778 = vpop.f32.mrf.mxu0
        %v779 = vadd.f32 %v371, %v778
        %v780 = vpop.f32.mrf.mxu0
        %781 = vmatprep.mubr.bf16.mxu0 0
        %782 = vmatmul.mubr.bf16.gmra.mxu0 %v518
        %v783 = vpop.f32.mrf.mxu0
        %v784 = vadd.f32 %v371, %v783
        %v785 = vpop.f32.mrf.mxu0
        %v786 = vpop.f32.mrf.mxu0
        %v787 = vadd.f32 %v371, %v786
        %v788 = vpop.f32.mrf.mxu0
        %789 = vmatprep.mubr.bf16.mxu0 0
        %790 = vmatmul.mubr.bf16.gmra.mxu0 %v519
        %v791 = vpop.f32.mrf.mxu0
        %v792 = vadd.f32 %v371, %v791
        %v793 = vpop.f32.mrf.mxu0
        %v794 = vpop.f32.mrf.mxu0
        %v795 = vadd.f32 %v371, %v794
        %v796 = vpop.f32.mrf.mxu0
        %797 = vmatprep.mubr.bf16.mxu0 0
        %798 = vmatmul.mubr.bf16.gmra.mxu0 %v520
        %v799 = vpop.f32.mrf.mxu0
        %v800 = vadd.f32 %v371, %v799
        %v801 = vpop.f32.mrf.mxu0
        %v802 = vpop.f32.mrf.mxu0
        %v803 = vadd.f32 %v371, %v802
        %v804 = vpop.f32.mrf.mxu0
        %805 = vmatprep.mubr.bf16.mxu0 0
        %806 = vmatmul.mubr.bf16.gmra.mxu0 %v521
        %v807 = vpop.f32.mrf.mxu0
        %v808 = vadd.f32 %v371, %v807
        %v809 = vpop.f32.mrf.mxu0
        %v810 = vpop.f32.mrf.mxu0
        %v811 = vadd.f32 %v371, %v810
        %v812 = vpop.f32.mrf.mxu0
        %813 = vmatprep.mubr.bf16.mxu0 0
        %814 = vmatmul.mubr.bf16.gmra.mxu0 %v522
        %v815 = vpop.f32.mrf.mxu0
        %v816 = vadd.f32 %v371, %v815
        %v817 = vpop.f32.mrf.mxu0
        %v818 = vpop.f32.mrf.mxu0
        %v819 = vadd.f32 %v371, %v818
        %v820 = vpop.f32.mrf.mxu0
        %821 = vmatprep.mubr.bf16.mxu0 0
        %822 = vmatmul.mubr.bf16.gmra.mxu0 %v523
        %v823 = vpop.f32.mrf.mxu0
        %v824 = vadd.f32 %v371, %v823
        %v825 = vpop.f32.mrf.mxu0
        %v826 = vpop.f32.mrf.mxu0
        %v827 = vadd.f32 %v371, %v826
        %v828 = vpop.f32.mrf.mxu0
        %829 = vmatprep.mubr.bf16.mxu0 0
        %830 = vmatmul.mubr.bf16.gmra.mxu0 %v524
        %v831 = vpop.f32.mrf.mxu0
        %v832 = vadd.f32 %v371, %v831
        %v833 = vpop.f32.mrf.mxu0
        %v834 = vpop.f32.mrf.mxu0
        %v835 = vadd.f32 %v371, %v834
        %v836 = vpop.f32.mrf.mxu0
        %837 = vmatprep.mubr.bf16.mxu0 0
        %838 = vmatmul.mubr.bf16.gmra.mxu0 %v525
        %v839 = vpop.f32.mrf.mxu0
        %v840 = vadd.f32 %v371, %v839
        %v841 = vpop.f32.mrf.mxu0
        %v842 = vpop.f32.mrf.mxu0
        %v843 = vadd.f32 %v371, %v842
        %v844 = vpop.f32.mrf.mxu0
        %845 = vmatprep.mubr.bf16.mxu0 0
        %846 = vmatmul.mubr.bf16.gmra.mxu0 %v526
        %v847 = vpop.f32.mrf.mxu0
        %v848 = vadd.f32 %v371, %v847
        %v849 = vpop.f32.mrf.mxu0
        %v850 = vpop.f32.mrf.mxu0
        %v851 = vadd.f32 %v371, %v850
        %v852 = vpop.f32.mrf.mxu0
        %853 = vmatprep.mubr.bf16.mxu0 0
        %854 = vmatmul.mubr.bf16.gmra.mxu0 %v527
        %v855 = vpop.f32.mrf.mxu0
        %v856 = vadd.f32 %v371, %v855
        %v857 = vpop.f32.mrf.mxu0
        %v858 = vpop.f32.mrf.mxu0
        %v859 = vadd.f32 %v371, %v858
        %v860 = vpop.f32.mrf.mxu0
        %861 = vmatprep.mubr.bf16.mxu0 0
        %862 = vmatmul.mubr.bf16.gmra.mxu0 %v528
        %v863 = vpop.f32.mrf.mxu0
        %v864 = vadd.f32 %v371, %v863
        %v865 = vpop.f32.mrf.mxu0
        %v866 = vpop.f32.mrf.mxu0
        %v867 = vadd.f32 %v371, %v866
        %v868 = vpop.f32.mrf.mxu0
        %869 = vmatprep.mubr.bf16.mxu0 0
        %870 = vmatmul.mubr.bf16.gmra.mxu0 %v529
        %v871 = vpop.f32.mrf.mxu0
        %v872 = vadd.f32 %v371, %v871
        %v873 = vpop.f32.mrf.mxu0
        %v874 = vpop.f32.mrf.mxu0
        %v875 = vadd.f32 %v371, %v874
        %v876 = vpop.f32.mrf.mxu0
        %877 = vmatprep.mubr.bf16.mxu0 0
        %878 = vmatmul.mubr.bf16.gmra.mxu0 %v530
        %v879 = vpop.f32.mrf.mxu0
        %v880 = vadd.f32 %v371, %v879
        %v881 = vpop.f32.mrf.mxu0
        %v882 = vpop.f32.mrf.mxu0
        %v883 = vadd.f32 %v371, %v882
        %v884 = vpop.f32.mrf.mxu0
        %885 = vmatprep.mubr.bf16.mxu0 0
        %886 = vmatmul.mubr.bf16.gmra.mxu0 %v531
        %v887 = vpop.f32.mrf.mxu0
        %v888 = vadd.f32 %v371, %v887
        %v889 = vpop.f32.mrf.mxu0
        %v890 = vpop.f32.mrf.mxu0
        %v891 = vadd.f32 %v371, %v890
        %v892 = vpop.f32.mrf.mxu0
        %893 = vmatprep.mubr.bf16.mxu0 0
        %894 = vmatmul.mubr.bf16.gmra.mxu0 %v532
        %v895 = vpop.f32.mrf.mxu0
        %v896 = vadd.f32 %v371, %v895
        %v897 = vpop.f32.mrf.mxu0
        %v898 = vpop.f32.mrf.mxu0
        %v899 = vadd.f32 %v371, %v898
        %v900 = vpop.f32.mrf.mxu0
        %901 = vdwg.mxu0
        %v902 = vmax.f32 %v648, 0.0
        %v903 = vmax.f32 %v651, 0.0
        %v904 = vmax.f32 %v656, 0.0
        %v905 = vmax.f32 %v659, 0.0
        %v906 = vmax.f32 %v664, 0.0
        %v907 = vmax.f32 %v667, 0.0
        %v908 = vmax.f32 %v672, 0.0
        %v909 = vmax.f32 %v675, 0.0
        %v910 = vmax.f32 %v680, 0.0
        %v911 = vmax.f32 %v683, 0.0
        %v912 = vmax.f32 %v688, 0.0
        %v913 = vmax.f32 %v691, 0.0
        %v914 = vmax.f32 %v696, 0.0
        %v915 = vmax.f32 %v699, 0.0
        %v916 = vmax.f32 %v704, 0.0
        %v917 = vmax.f32 %v707, 0.0
        %v918 = vmax.f32 %v712, 0.0
        %v919 = vmax.f32 %v715, 0.0
        %v920 = vmax.f32 %v720, 0.0
        %v921 = vmax.f32 %v723, 0.0
        %v922 = vmax.f32 %v728, 0.0
        %v923 = vmax.f32 %v731, 0.0
        %v924 = vmax.f32 %v736, 0.0
        %v925 = vmax.f32 %v739, 0.0
        %v926 = vmax.f32 %v744, 0.0
        %v927 = vmax.f32 %v747, 0.0
        %v928 = vmax.f32 %v752, 0.0
        %v929 = vmax.f32 %v755, 0.0
        %v930 = vmax.f32 %v760, 0.0
        %v931 = vmax.f32 %v763, 0.0
        %v932 = vmax.f32 %v768, 0.0
        %v933 = vmax.f32 %v771, 0.0
        %v934 = vmax.f32 %v776, 0.0
        %v935 = vmax.f32 %v779, 0.0
        %v936 = vmax.f32 %v784, 0.0
        %v937 = vmax.f32 %v787, 0.0
        %v938 = vmax.f32 %v792, 0.0
        %v939 = vmax.f32 %v795, 0.0
        %v940 = vmax.f32 %v800, 0.0
        %v941 = vmax.f32 %v803, 0.0
        %v942 = vmax.f32 %v808, 0.0
        %v943 = vmax.f32 %v811, 0.0
        %v944 = vmax.f32 %v816, 0.0
        %v945 = vmax.f32 %v819, 0.0
        %v946 = vmax.f32 %v824, 0.0
        %v947 = vmax.f32 %v827, 0.0
        %v948 = vmax.f32 %v832, 0.0
        %v949 = vmax.f32 %v835, 0.0
        %v950 = vmax.f32 %v840, 0.0
        %v951 = vmax.f32 %v843, 0.0
        %v952 = vmax.f32 %v848, 0.0
        %v953 = vmax.f32 %v851, 0.0
        %v954 = vmax.f32 %v856, 0.0
        %v955 = vmax.f32 %v859, 0.0
        %v956 = vmax.f32 %v864, 0.0
        %v957 = vmax.f32 %v867, 0.0
        %v958 = vmax.f32 %v872, 0.0
        %v959 = vmax.f32 %v875, 0.0
        %v960 = vmax.f32 %v880, 0.0
        %v961 = vmax.f32 %v883, 0.0
        %v962 = vmax.f32 %v888, 0.0
        %v963 = vmax.f32 %v891, 0.0
        %v964 = vmax.f32 %v896, 0.0
        %v965 = vmax.f32 %v899, 0.0
        %v966 = vpack.c.bf16 %v903, %v902
        %v967 = vpack.c.bf16 %v905, %v904
        %v968 = vpack.c.bf16 %v907, %v906
        %v969 = vpack.c.bf16 %v909, %v908
        %v970 = vpack.c.bf16 %v911, %v910
        %v971 = vpack.c.bf16 %v913, %v912
        %v972 = vpack.c.bf16 %v915, %v914
        %v973 = vpack.c.bf16 %v917, %v916
        %v974 = vpack.c.bf16 %v919, %v918
        %v975 = vpack.c.bf16 %v921, %v920
        %v976 = vpack.c.bf16 %v923, %v922
        %v977 = vpack.c.bf16 %v925, %v924
        %v978 = vpack.c.bf16 %v927, %v926
        %v979 = vpack.c.bf16 %v929, %v928
        %v980 = vpack.c.bf16 %v931, %v930
        %v981 = vpack.c.bf16 %v933, %v932
        %v982 = vpack.c.bf16 %v935, %v934
        %v983 = vpack.c.bf16 %v937, %v936
        %v984 = vpack.c.bf16 %v939, %v938
        %v985 = vpack.c.bf16 %v941, %v940
        %v986 = vpack.c.bf16 %v943, %v942
        %v987 = vpack.c.bf16 %v945, %v944
        %v988 = vpack.c.bf16 %v947, %v946
        %v989 = vpack.c.bf16 %v949, %v948
        %v990 = vpack.c.bf16 %v951, %v950
        %v991 = vpack.c.bf16 %v953, %v952
        %v992 = vpack.c.bf16 %v955, %v954
        %v993 = vpack.c.bf16 %v957, %v956
        %v994 = vpack.c.bf16 %v959, %v958
        %v995 = vpack.c.bf16 %v961, %v960
        %v996 = vpack.c.bf16 %v963, %v962
        %v997 = vpack.c.bf16 %v965, %v964
        %v1030 = vunpack.c.l.b16 %v966
        %v1031 = vunpack.c.h.b16 %v966
        %v1032 = vunpack.c.l.b16 %v967
        %v1033 = vunpack.c.h.b16 %v967
        %v1034 = vunpack.c.l.b16 %v968
        %v1035 = vunpack.c.h.b16 %v968
        %v1036 = vunpack.c.l.b16 %v969
        %v1037 = vunpack.c.h.b16 %v969
        %v1038 = vunpack.c.l.b16 %v970
        %v1039 = vunpack.c.h.b16 %v970
        %v1040 = vunpack.c.l.b16 %v971
        %v1041 = vunpack.c.h.b16 %v971
        %v1042 = vunpack.c.l.b16 %v972
        %v1043 = vunpack.c.h.b16 %v972
        %v1044 = vunpack.c.l.b16 %v973
        %v1045 = vunpack.c.h.b16 %v973
        %v1046 = vunpack.c.l.b16 %v974
        %v1047 = vunpack.c.h.b16 %v974
        %v1048 = vunpack.c.l.b16 %v975
        %v1049 = vunpack.c.h.b16 %v975
        %v1050 = vunpack.c.l.b16 %v976
        %v1051 = vunpack.c.h.b16 %v976
        %v1052 = vunpack.c.l.b16 %v977
        %v1053 = vunpack.c.h.b16 %v977
        %v1054 = vunpack.c.l.b16 %v978
        %v1055 = vunpack.c.h.b16 %v978
        %v1056 = vunpack.c.l.b16 %v979
        %v1057 = vunpack.c.h.b16 %v979
        %v1058 = vunpack.c.l.b16 %v980
        %v1059 = vunpack.c.h.b16 %v980
        %v1060 = vunpack.c.l.b16 %v981
        %v1061 = vunpack.c.h.b16 %v981
        %v1062 = vunpack.c.l.b16 %v982
        %v1063 = vunpack.c.h.b16 %v982
        %v1064 = vunpack.c.l.b16 %v983
        %v1065 = vunpack.c.h.b16 %v983
        %v1066 = vunpack.c.l.b16 %v984
        %v1067 = vunpack.c.h.b16 %v984
        %v1068 = vunpack.c.l.b16 %v985
        %v1069 = vunpack.c.h.b16 %v985
        %v1070 = vunpack.c.l.b16 %v986
        %v1071 = vunpack.c.h.b16 %v986
        %v1072 = vunpack.c.l.b16 %v987
        %v1073 = vunpack.c.h.b16 %v987
        %v1074 = vunpack.c.l.b16 %v988
        %v1075 = vunpack.c.h.b16 %v988
        %v1076 = vunpack.c.l.b16 %v989
        %v1077 = vunpack.c.h.b16 %v989
        %v1078 = vunpack.c.l.b16 %v990
        %v1079 = vunpack.c.h.b16 %v990
        %v1080 = vunpack.c.l.b16 %v991
        %v1081 = vunpack.c.h.b16 %v991
        %v1082 = vunpack.c.l.b16 %v992
        %v1083 = vunpack.c.h.b16 %v992
        %v1084 = vunpack.c.l.b16 %v993
        %v1085 = vunpack.c.h.b16 %v993
        %v1086 = vunpack.c.l.b16 %v994
        %v1087 = vunpack.c.h.b16 %v994
        %v1088 = vunpack.c.l.b16 %v995
        %v1089 = vunpack.c.h.b16 %v995
        %v1090 = vunpack.c.l.b16 %v996
        %v1091 = vunpack.c.h.b16 %v996
        %v1092 = vunpack.c.l.b16 %v997
        %v1093 = vunpack.c.h.b16 %v997
        %v1094 = vpack.c.b16 %v1030, %v1030
        %v1095 = vpack.c.b16 %v1031, %v1031
        %v1096 = vpack.c.b16 %v1032, %v1032
        %v1097 = vpack.c.b16 %v1033, %v1033
        %v1098 = vpack.c.b16 %v1034, %v1034
        %v1099 = vpack.c.b16 %v1035, %v1035
        %v1100 = vpack.c.b16 %v1036, %v1036
        %v1101 = vpack.c.b16 %v1037, %v1037
        %v1102 = vpack.c.b16 %v1038, %v1038
        %v1103 = vpack.c.b16 %v1039, %v1039
        %v1104 = vpack.c.b16 %v1040, %v1040
        %v1105 = vpack.c.b16 %v1041, %v1041
        %v1106 = vpack.c.b16 %v1042, %v1042
        %v1107 = vpack.c.b16 %v1043, %v1043
        %v1108 = vpack.c.b16 %v1044, %v1044
        %v1109 = vpack.c.b16 %v1045, %v1045
        %v1110 = vpack.c.b16 %v1046, %v1046
        %v1111 = vpack.c.b16 %v1047, %v1047
        %v1112 = vpack.c.b16 %v1048, %v1048
        %v1113 = vpack.c.b16 %v1049, %v1049
        %v1114 = vpack.c.b16 %v1050, %v1050
        %v1115 = vpack.c.b16 %v1051, %v1051
        %v1116 = vpack.c.b16 %v1052, %v1052
        %v1117 = vpack.c.b16 %v1053, %v1053
        %v1118 = vpack.c.b16 %v1054, %v1054
        %v1119 = vpack.c.b16 %v1055, %v1055
        %v1120 = vpack.c.b16 %v1056, %v1056
        %v1121 = vpack.c.b16 %v1057, %v1057
        %v1122 = vpack.c.b16 %v1058, %v1058
        %v1123 = vpack.c.b16 %v1059, %v1059
        %v1124 = vpack.c.b16 %v1060, %v1060
        %v1125 = vpack.c.b16 %v1061, %v1061
        %v1126 = vpack.c.b16 %v1062, %v1062
        %v1127 = vpack.c.b16 %v1063, %v1063
        %v1128 = vpack.c.b16 %v1064, %v1064
        %v1129 = vpack.c.b16 %v1065, %v1065
        %v1130 = vpack.c.b16 %v1066, %v1066
        %v1131 = vpack.c.b16 %v1067, %v1067
        %v1132 = vpack.c.b16 %v1068, %v1068
        %v1133 = vpack.c.b16 %v1069, %v1069
        %v1134 = vpack.c.b16 %v1070, %v1070
        %v1135 = vpack.c.b16 %v1071, %v1071
        %v1136 = vpack.c.b16 %v1072, %v1072
        %v1137 = vpack.c.b16 %v1073, %v1073
        %v1138 = vpack.c.b16 %v1074, %v1074
        %v1139 = vpack.c.b16 %v1075, %v1075
        %v1140 = vpack.c.b16 %v1076, %v1076
        %v1141 = vpack.c.b16 %v1077, %v1077
        %v1142 = vpack.c.b16 %v1078, %v1078
        %v1143 = vpack.c.b16 %v1079, %v1079
        %v1144 = vpack.c.b16 %v1080, %v1080
        %v1145 = vpack.c.b16 %v1081, %v1081
        %v1146 = vpack.c.b16 %v1082, %v1082
        %v1147 = vpack.c.b16 %v1083, %v1083
        %v1148 = vpack.c.b16 %v1084, %v1084
        %v1149 = vpack.c.b16 %v1085, %v1085
        %v1150 = vpack.c.b16 %v1086, %v1086
        %v1151 = vpack.c.b16 %v1087, %v1087
        %v1152 = vpack.c.b16 %v1088, %v1088
        %v1153 = vpack.c.b16 %v1089, %v1089
        %v1154 = vpack.c.b16 %v1090, %v1090
        %v1155 = vpack.c.b16 %v1091, %v1091
        %v1156 = vpack.c.b16 %v1092, %v1092
        %v1157 = vpack.c.b16 %v1093, %v1093
        %1222 = vst [vmem:[%s247] sm:$0xf] %v1094
        %1223 = vst [vmem:[%s247 + $0x4] sm:$0xf] %v1095
        %1224 = vst [vmem:[%s247 + $0x8] sm:$0xf] %v1096
        %1225 = vst [vmem:[%s247 + $0xc] sm:$0xf] %v1097
        %1226 = vst [vmem:[%s247 + $0x10] sm:$0xf] %v1098
        %1227 = vst [vmem:[%s247 + $0x14] sm:$0xf] %v1099
        %1228 = vst [vmem:[%s247 + $0x18] sm:$0xf] %v1100
        %1229 = vst [vmem:[%s247 + $0x1c] sm:$0xf] %v1101
        %1230 = vst [vmem:[%s247 + $0x20] sm:$0xf] %v1102
        %1231 = vst [vmem:[%s247 + $0x24] sm:$0xf] %v1103
        %1232 = vst [vmem:[%s247 + $0x28] sm:$0xf] %v1104
        %1233 = vst [vmem:[%s247 + $0x2c] sm:$0xf] %v1105
        %1234 = vst [vmem:[%s247 + $0x30] sm:$0xf] %v1106
        %1235 = vst [vmem:[%s247 + $0x34] sm:$0xf] %v1107
        %1236 = vst [vmem:[%s247 + $0x38] sm:$0xf] %v1108
        %1237 = vst [vmem:[%s247 + $0x3c] sm:$0xf] %v1109
        %1238 = vst [vmem:[%s247 + $0x40] sm:$0xf] %v1110
        %1239 = vst [vmem:[%s247 + $0x44] sm:$0xf] %v1111
        %1240 = vst [vmem:[%s247 + $0x48] sm:$0xf] %v1112
        %1241 = vst [vmem:[%s247 + $0x4c] sm:$0xf] %v1113
        %1242 = vst [vmem:[%s247 + $0x50] sm:$0xf] %v1114
        %1243 = vst [vmem:[%s247 + $0x54] sm:$0xf] %v1115
        %1244 = vst [vmem:[%s247 + $0x58] sm:$0xf] %v1116
        %1245 = vst [vmem:[%s247 + $0x5c] sm:$0xf] %v1117
        %1246 = vst [vmem:[%s247 + $0x60] sm:$0xf] %v1118
        %1247 = vst [vmem:[%s247 + $0x64] sm:$0xf] %v1119
        %1248 = vst [vmem:[%s247 + $0x68] sm:$0xf] %v1120
        %1249 = vst [vmem:[%s247 + $0x6c] sm:$0xf] %v1121
        %1250 = vst [vmem:[%s247 + $0x70] sm:$0xf] %v1122
        %1251 = vst [vmem:[%s247 + $0x74] sm:$0xf] %v1123
        %1252 = vst [vmem:[%s247 + $0x78] sm:$0xf] %v1124
        %1253 = vst [vmem:[%s247 + $0x7c] sm:$0xf] %v1125
        %1254 = vst [vmem:[%s247 + $0x80] sm:$0xf] %v1126
        %1255 = vst [vmem:[%s247 + $0x84] sm:$0xf] %v1127
        %1256 = vst [vmem:[%s247 + $0x88] sm:$0xf] %v1128
        %1257 = vst [vmem:[%s247 + $0x8c] sm:$0xf] %v1129
        %1258 = vst [vmem:[%s247 + $0x90] sm:$0xf] %v1130
        %1259 = vst [vmem:[%s247 + $0x94] sm:$0xf] %v1131
        %1260 = vst [vmem:[%s247 + $0x98] sm:$0xf] %v1132
        %1261 = vst [vmem:[%s247 + $0x9c] sm:$0xf] %v1133
        %1262 = vst [vmem:[%s247 + $0xa0] sm:$0xf] %v1134
        %1263 = vst [vmem:[%s247 + $0xa4] sm:$0xf] %v1135
        %1264 = vst [vmem:[%s247 + $0xa8] sm:$0xf] %v1136
        %1265 = vst [vmem:[%s247 + $0xac] sm:$0xf] %v1137
        %1266 = vst [vmem:[%s247 + $0xb0] sm:$0xf] %v1138
        %1267 = vst [vmem:[%s247 + $0xb4] sm:$0xf] %v1139
        %1268 = vst [vmem:[%s247 + $0xb8] sm:$0xf] %v1140
        %1269 = vst [vmem:[%s247 + $0xbc] sm:$0xf] %v1141
        %1270 = vst [vmem:[%s247 + $0xc0] sm:$0xf] %v1142
        %1271 = vst [vmem:[%s247 + $0xc4] sm:$0xf] %v1143
        %1272 = vst [vmem:[%s247 + $0xc8] sm:$0xf] %v1144
        %1273 = vst [vmem:[%s247 + $0xcc] sm:$0xf] %v1145
        %1274 = vst [vmem:[%s247 + $0xd0] sm:$0xf] %v1146
        %1275 = vst [vmem:[%s247 + $0xd4] sm:$0xf] %v1147
        %1276 = vst [vmem:[%s247 + $0xd8] sm:$0xf] %v1148
        %1277 = vst [vmem:[%s247 + $0xdc] sm:$0xf] %v1149
        %1278 = vst [vmem:[%s247 + $0xe0] sm:$0xf] %v1150
        %1279 = vst [vmem:[%s247 + $0xe4] sm:$0xf] %v1151
        %1280 = vst [vmem:[%s247 + $0xe8] sm:$0xf] %v1152
        %1281 = vst [vmem:[%s247 + $0xec] sm:$0xf] %v1153
        %1282 = vst [vmem:[%s247 + $0xf0] sm:$0xf] %v1154
        %1283 = vst [vmem:[%s247 + $0xf4] sm:$0xf] %v1155
        %1284 = vst [vmem:[%s247 + $0xf8] sm:$0xf] %v1156
        %1285 = vst [vmem:[%s247 + $0xfc] sm:$0xf] %v1157
        %s1286 = sand.u32 %s129, 1
        %s1287 = sand.u32 %s129, 1
        %s1288 = smul.addr %s1287, 256
        %s1289 = scalar_lea.vmem [#allocation2], %s1288
        // Predicated region
        $region33: #{tpu_custom_call.1} parent=31 // pred_check
          %p1290 = pneg %p139
        $region34: #{tpu_custom_call.1} parent=31 // pred_check_branch
          %1292 = sbr.rel (%p1290) target = $region36
        $region35: #{tpu_custom_call.1} parent=31 // pred_region
          %s1293 = smul.u32 64, %s20
          %s1294 = ssub.s32 721, %s1293
          %p1295 = scmp.lt.s32.totalorder %s1294, 64
          %s1296 = scalar_select %p1295, %s1294, 64
          %s1297 = smul.u32 64, %s1296
          %p1298 = scmp.ne.s32.totalorder 0, %s1297
          %s1299 = sadd.s32 %s21, %s1293
          %s1300 = smul.addr %s19, 721
          %s1301 = sadd.s32 %s1299, %s1300
          %s1302 = smul.addr %s1301, 4
          %s1303 = scalar_lea.vmem %s3, %s1302
          // Predicated region
          $region37: #{tpu_custom_call.1} parent=35 // pred_check
            %p1304 = pneg %p1298
          $region38: #{tpu_custom_call.1} parent=35 // pred_check_branch
            %1306 = sbr.rel (%p1304) target = $region40
          $region39: #{tpu_custom_call.1} parent=35 // pred_region
            // Predicated region
            $region41: #{tpu_custom_call.1} parent=39 // pred_check
              _
            $region42: #{tpu_custom_call.1} parent=39 // pred_check_branch
              %1308 = sbr.rel target = $region44
            $region43: #{tpu_custom_call.1} parent=39 // pred_region
              // Predicated region
              $region63: #{tpu_custom_call.1} parent=43 // pred_check
                _
              $region64: #{tpu_custom_call.1} parent=43 // pred_check_branch
                %1484 = sbr.rel (0) target = $region66
              $region65: #{tpu_custom_call.1} parent=43 // pred_region
                %s1486 = ssub.s32 16, 1
                %s1487 = sshrl.u32 %s1296, 6
                // While loop
                $region67: #{tpu_custom_call.1} parent=65 // loop_pre_header
                  _
                $region68: #{tpu_custom_call.1} parent=65 // loop_header
                  %s1489 = sphi 0, %s1491
                  %p1490 = scmp.ge.s32.totalorder %s1489, %s1487
                  %s1494 = sphi 0, %s1627
                  %s1495 = sphi %s1289, %s1630
                  %s1496 = sphi %s1303, %s1631
                $region69: #{tpu_custom_call.1} parent=65 // loop_header_branch
                  %1493 = sbr.rel (%p1490) target = $region73
                $region70: #{tpu_custom_call.1} parent=65 // loop_body
                  %v1497 = vld [vmem:[%s1495] sm:%s1486]
                  %1498 = vst [vmem:[%s1496] sm:%s1486] %v1497
                  %v1499 = vld [vmem:[%s1495 + $0x4] sm:%s1486]
                  %1500 = vst [vmem:[%s1496 + $0x4] sm:%s1486] %v1499
                  %v1501 = vld [vmem:[%s1495 + $0x8] sm:%s1486]
                  %1502 = vst [vmem:[%s1496 + $0x8] sm:%s1486] %v1501
                  %v1503 = vld [vmem:[%s1495 + $0xc] sm:%s1486]
                  %1504 = vst [vmem:[%s1496 + $0xc] sm:%s1486] %v1503
                  %v1505 = vld [vmem:[%s1495 + $0x10] sm:%s1486]
                  %1506 = vst [vmem:[%s1496 + $0x10] sm:%s1486] %v1505
                  %v1507 = vld [vmem:[%s1495 + $0x14] sm:%s1486]
                  %1508 = vst [vmem:[%s1496 + $0x14] sm:%s1486] %v1507
                  %v1509 = vld [vmem:[%s1495 + $0x18] sm:%s1486]
                  %1510 = vst [vmem:[%s1496 + $0x18] sm:%s1486] %v1509
                  %v1511 = vld [vmem:[%s1495 + $0x1c] sm:%s1486]
                  %1512 = vst [vmem:[%s1496 + $0x1c] sm:%s1486] %v1511
                  %v1513 = vld [vmem:[%s1495 + $0x20] sm:%s1486]
                  %1514 = vst [vmem:[%s1496 + $0x20] sm:%s1486] %v1513
                  %v1515 = vld [vmem:[%s1495 + $0x24] sm:%s1486]
                  %1516 = vst [vmem:[%s1496 + $0x24] sm:%s1486] %v1515
                  %v1517 = vld [vmem:[%s1495 + $0x28] sm:%s1486]
                  %1518 = vst [vmem:[%s1496 + $0x28] sm:%s1486] %v1517
                  %v1519 = vld [vmem:[%s1495 + $0x2c] sm:%s1486]
                  %1520 = vst [vmem:[%s1496 + $0x2c] sm:%s1486] %v1519
                  %v1521 = vld [vmem:[%s1495 + $0x30] sm:%s1486]
                  %1522 = vst [vmem:[%s1496 + $0x30] sm:%s1486] %v1521
                  %v1523 = vld [vmem:[%s1495 + $0x34] sm:%s1486]
                  %1524 = vst [vmem:[%s1496 + $0x34] sm:%s1486] %v1523
                  %v1525 = vld [vmem:[%s1495 + $0x38] sm:%s1486]
                  %1526 = vst [vmem:[%s1496 + $0x38] sm:%s1486] %v1525
                  %v1527 = vld [vmem:[%s1495 + $0x3c] sm:%s1486]
                  %1528 = vst [vmem:[%s1496 + $0x3c] sm:%s1486] %v1527
                  %v1529 = vld [vmem:[%s1495 + $0x40] sm:%s1486]
                  %1530 = vst [vmem:[%s1496 + $0x40] sm:%s1486] %v1529
                  %v1531 = vld [vmem:[%s1495 + $0x44] sm:%s1486]
                  %1532 = vst [vmem:[%s1496 + $0x44] sm:%s1486] %v1531
                  %v1533 = vld [vmem:[%s1495 + $0x48] sm:%s1486]
                  %1534 = vst [vmem:[%s1496 + $0x48] sm:%s1486] %v1533
                  %v1535 = vld [vmem:[%s1495 + $0x4c] sm:%s1486]
                  %1536 = vst [vmem:[%s1496 + $0x4c] sm:%s1486] %v1535
                  %v1537 = vld [vmem:[%s1495 + $0x50] sm:%s1486]
                  %1538 = vst [vmem:[%s1496 + $0x50] sm:%s1486] %v1537
                  %v1539 = vld [vmem:[%s1495 + $0x54] sm:%s1486]
                  %1540 = vst [vmem:[%s1496 + $0x54] sm:%s1486] %v1539
                  %v1541 = vld [vmem:[%s1495 + $0x58] sm:%s1486]
                  %1542 = vst [vmem:[%s1496 + $0x58] sm:%s1486] %v1541
                  %v1543 = vld [vmem:[%s1495 + $0x5c] sm:%s1486]
                  %1544 = vst [vmem:[%s1496 + $0x5c] sm:%s1486] %v1543
                  %v1545 = vld [vmem:[%s1495 + $0x60] sm:%s1486]
                  %1546 = vst [vmem:[%s1496 + $0x60] sm:%s1486] %v1545
                  %v1547 = vld [vmem:[%s1495 + $0x64] sm:%s1486]
                  %1548 = vst [vmem:[%s1496 + $0x64] sm:%s1486] %v1547
                  %v1549 = vld [vmem:[%s1495 + $0x68] sm:%s1486]
                  %1550 = vst [vmem:[%s1496 + $0x68] sm:%s1486] %v1549
                  %v1551 = vld [vmem:[%s1495 + $0x6c] sm:%s1486]
                  %1552 = vst [vmem:[%s1496 + $0x6c] sm:%s1486] %v1551
                  %v1553 = vld [vmem:[%s1495 + $0x70] sm:%s1486]
                  %1554 = vst [vmem:[%s1496 + $0x70] sm:%s1486] %v1553
                  %v1555 = vld [vmem:[%s1495 + $0x74] sm:%s1486]
                  %1556 = vst [vmem:[%s1496 + $0x74] sm:%s1486] %v1555
                  %v1557 = vld [vmem:[%s1495 + $0x78] sm:%s1486]
                  %1558 = vst [vmem:[%s1496 + $0x78] sm:%s1486] %v1557
                  %v1559 = vld [vmem:[%s1495 + $0x7c] sm:%s1486]
                  %1560 = vst [vmem:[%s1496 + $0x7c] sm:%s1486] %v1559
                  %v1561 = vld [vmem:[%s1495 + $0x80] sm:%s1486]
                  %1562 = vst [vmem:[%s1496 + $0x80] sm:%s1486] %v1561
                  %v1563 = vld [vmem:[%s1495 + $0x84] sm:%s1486]
                  %1564 = vst [vmem:[%s1496 + $0x84] sm:%s1486] %v1563
                  %v1565 = vld [vmem:[%s1495 + $0x88] sm:%s1486]
                  %1566 = vst [vmem:[%s1496 + $0x88] sm:%s1486] %v1565
                  %v1567 = vld [vmem:[%s1495 + $0x8c] sm:%s1486]
                  %1568 = vst [vmem:[%s1496 + $0x8c] sm:%s1486] %v1567
                  %v1569 = vld [vmem:[%s1495 + $0x90] sm:%s1486]
                  %1570 = vst [vmem:[%s1496 + $0x90] sm:%s1486] %v1569
                  %v1571 = vld [vmem:[%s1495 + $0x94] sm:%s1486]
                  %1572 = vst [vmem:[%s1496 + $0x94] sm:%s1486] %v1571
                  %v1573 = vld [vmem:[%s1495 + $0x98] sm:%s1486]
                  %1574 = vst [vmem:[%s1496 + $0x98] sm:%s1486] %v1573
                  %v1575 = vld [vmem:[%s1495 + $0x9c] sm:%s1486]
                  %1576 = vst [vmem:[%s1496 + $0x9c] sm:%s1486] %v1575
                  %v1577 = vld [vmem:[%s1495 + $0xa0] sm:%s1486]
                  %1578 = vst [vmem:[%s1496 + $0xa0] sm:%s1486] %v1577
                  %v1579 = vld [vmem:[%s1495 + $0xa4] sm:%s1486]
                  %1580 = vst [vmem:[%s1496 + $0xa4] sm:%s1486] %v1579
                  %v1581 = vld [vmem:[%s1495 + $0xa8] sm:%s1486]
                  %1582 = vst [vmem:[%s1496 + $0xa8] sm:%s1486] %v1581
                  %v1583 = vld [vmem:[%s1495 + $0xac] sm:%s1486]
                  %1584 = vst [vmem:[%s1496 + $0xac] sm:%s1486] %v1583
                  %v1585 = vld [vmem:[%s1495 + $0xb0] sm:%s1486]
                  %1586 = vst [vmem:[%s1496 + $0xb0] sm:%s1486] %v1585
                  %v1587 = vld [vmem:[%s1495 + $0xb4] sm:%s1486]
                  %1588 = vst [vmem:[%s1496 + $0xb4] sm:%s1486] %v1587
                  %v1589 = vld [vmem:[%s1495 + $0xb8] sm:%s1486]
                  %1590 = vst [vmem:[%s1496 + $0xb8] sm:%s1486] %v1589
                  %v1591 = vld [vmem:[%s1495 + $0xbc] sm:%s1486]
                  %1592 = vst [vmem:[%s1496 + $0xbc] sm:%s1486] %v1591
                  %v1593 = vld [vmem:[%s1495 + $0xc0] sm:%s1486]
                  %1594 = vst [vmem:[%s1496 + $0xc0] sm:%s1486] %v1593
                  %v1595 = vld [vmem:[%s1495 + $0xc4] sm:%s1486]
                  %1596 = vst [vmem:[%s1496 + $0xc4] sm:%s1486] %v1595
                  %v1597 = vld [vmem:[%s1495 + $0xc8] sm:%s1486]
                  %1598 = vst [vmem:[%s1496 + $0xc8] sm:%s1486] %v1597
                  %v1599 = vld [vmem:[%s1495 + $0xcc] sm:%s1486]
                  %1600 = vst [vmem:[%s1496 + $0xcc] sm:%s1486] %v1599
                  %v1601 = vld [vmem:[%s1495 + $0xd0] sm:%s1486]
                  %1602 = vst [vmem:[%s1496 + $0xd0] sm:%s1486] %v1601
                  %v1603 = vld [vmem:[%s1495 + $0xd4] sm:%s1486]
                  %1604 = vst [vmem:[%s1496 + $0xd4] sm:%s1486] %v1603
                  %v1605 = vld [vmem:[%s1495 + $0xd8] sm:%s1486]
                  %1606 = vst [vmem:[%s1496 + $0xd8] sm:%s1486] %v1605
                  %v1607 = vld [vmem:[%s1495 + $0xdc] sm:%s1486]
                  %1608 = vst [vmem:[%s1496 + $0xdc] sm:%s1486] %v1607
                  %v1609 = vld [vmem:[%s1495 + $0xe0] sm:%s1486]
                  %1610 = vst [vmem:[%s1496 + $0xe0] sm:%s1486] %v1609
                  %v1611 = vld [vmem:[%s1495 + $0xe4] sm:%s1486]
                  %1612 = vst [vmem:[%s1496 + $0xe4] sm:%s1486] %v1611
                  %v1613 = vld [vmem:[%s1495 + $0xe8] sm:%s1486]
                  %1614 = vst [vmem:[%s1496 + $0xe8] sm:%s1486] %v1613
                  %v1615 = vld [vmem:[%s1495 + $0xec] sm:%s1486]
                  %1616 = vst [vmem:[%s1496 + $0xec] sm:%s1486] %v1615
                  %v1617 = vld [vmem:[%s1495 + $0xf0] sm:%s1486]
                  %1618 = vst [vmem:[%s1496 + $0xf0] sm:%s1486] %v1617
                  %v1619 = vld [vmem:[%s1495 + $0xf4] sm:%s1486]
                  %1620 = vst [vmem:[%s1496 + $0xf4] sm:%s1486] %v1619
                  %v1621 = vld [vmem:[%s1495 + $0xf8] sm:%s1486]
                  %1622 = vst [vmem:[%s1496 + $0xf8] sm:%s1486] %v1621
                  %v1623 = vld [vmem:[%s1495 + $0xfc] sm:%s1486]
                  %1624 = vst [vmem:[%s1496 + $0xfc] sm:%s1486] %v1623
                  %s1625 = sadd.s32 1, %s1494
                  %p1626 = scmp.ge.s32.totalorder %s1625, %s1487
                  %s1627 = scalar_select %p1626, 0, %s1625
                  %s1628 = smul.u32 %s1627, 256
                  %s1629 = smul.u32 %s1627, 256
                  %s1630 = scalar_lea.vmem %s1289, %s1628 [#allocation2]
                  %s1631 = scalar_lea.vmem %s1303, %s1629
                $region71: #{tpu_custom_call.1} parent=65 // loop_footer
                  %s1491 = sadd.s32 %s1489, 1
                $region72: #{tpu_custom_call.1} parent=65 // loop_footer_branch
                  %1488 = sbr.rel target = $region68
                $region73: #{tpu_custom_call.1} parent=65 // loop_exit
                  _
                %s1632 = sshrl.u32 %s1296, 6
                %s1633 = sand.u32 %s1296, 63
                %s1634 = smul.u32 %s1632, 64
                %s1635 = smul.u32 4, %s1634
                %s1636 = scalar_lea.vmem %s1289, %s1635 [#allocation2]
                %s1637 = smul.u32 4, %s1634
                %s1638 = scalar_lea.vmem %s1303, %s1637
                // While loop
                $region74: #{tpu_custom_call.1} parent=65 // loop_pre_header
                  _
                $region75: #{tpu_custom_call.1} parent=65 // loop_header
                  %s1640 = sphi 0, %s1642
                  %p1641 = scmp.ge.s32.totalorder %s1640, %s1633
                  %s1645 = sphi 0, %s1652
                  %s1646 = sphi %s1636, %s1655
                  %s1647 = sphi %s1638, %s1656
                $region76: #{tpu_custom_call.1} parent=65 // loop_header_branch
                  %1644 = sbr.rel (%p1641) target = $region80
                $region77: #{tpu_custom_call.1} parent=65 // loop_body
                  %v1648 = vld [vmem:[%s1646] sm:%s1486]
                  %1649 = vst [vmem:[%s1647] sm:%s1486] %v1648
                  %s1650 = sadd.s32 1, %s1645
                  %p1651 = scmp.ge.s32.totalorder %s1650, %s1633
                  %s1652 = scalar_select %p1651, 0, %s1650
                  %s1653 = smul.u32 %s1652, 4
                  %s1654 = smul.u32 %s1652, 4
                  %s1655 = scalar_lea.vmem %s1636, %s1653 [#allocation2]
                  %s1656 = scalar_lea.vmem %s1638, %s1654
                $region78: #{tpu_custom_call.1} parent=65 // loop_footer
                  %s1642 = sadd.s32 %s1640, 1
                $region79: #{tpu_custom_call.1} parent=65 // loop_footer_branch
                  %1639 = sbr.rel target = $region75
                $region80: #{tpu_custom_call.1} parent=65 // loop_exit
                  _
              $region66: #{tpu_custom_call.1} parent=43 // pred_fallthru
                _
            $region44: #{tpu_custom_call.1} parent=39 // pred_fallthru
              _
            // Predicated region
            $region45: #{tpu_custom_call.1} parent=39 // pred_check
              _
            $region46: #{tpu_custom_call.1} parent=39 // pred_check_branch
              %1310 = sbr.rel (0) target = $region48
            $region47: #{tpu_custom_call.1} parent=39 // pred_region
              %s1312 = ssub.s32 16, 1
              %s1313 = sshrl.u32 %s1296, 6
              // While loop
              $region49: #{tpu_custom_call.1} parent=47 // loop_pre_header
                _
              $region50: #{tpu_custom_call.1} parent=47 // loop_header
                %s1315 = sphi 0, %s1317
                %p1316 = scmp.ge.s32.totalorder %s1315, %s1313
                %s1320 = sphi 0, %s1453
                %s1321 = sphi %s1289, %s1456
                %s1322 = sphi %s1303, %s1457
              $region51: #{tpu_custom_call.1} parent=47 // loop_header_branch
                %1319 = sbr.rel (%p1316) target = $region55
              $region52: #{tpu_custom_call.1} parent=47 // loop_body
                %v1323 = vld [vmem:[%s1321] sm:%s1312]
                %1324 = vst [vmem:[%s1322] sm:%s1312] %v1323
                %v1325 = vld [vmem:[%s1321 + $0x4] sm:%s1312]
                %1326 = vst [vmem:[%s1322 + $0x4] sm:%s1312] %v1325
                %v1327 = vld [vmem:[%s1321 + $0x8] sm:%s1312]
                %1328 = vst [vmem:[%s1322 + $0x8] sm:%s1312] %v1327
                %v1329 = vld [vmem:[%s1321 + $0xc] sm:%s1312]
                %1330 = vst [vmem:[%s1322 + $0xc] sm:%s1312] %v1329
                %v1331 = vld [vmem:[%s1321 + $0x10] sm:%s1312]
                %1332 = vst [vmem:[%s1322 + $0x10] sm:%s1312] %v1331
                %v1333 = vld [vmem:[%s1321 + $0x14] sm:%s1312]
                %1334 = vst [vmem:[%s1322 + $0x14] sm:%s1312] %v1333
                %v1335 = vld [vmem:[%s1321 + $0x18] sm:%s1312]
                %1336 = vst [vmem:[%s1322 + $0x18] sm:%s1312] %v1335
                %v1337 = vld [vmem:[%s1321 + $0x1c] sm:%s1312]
                %1338 = vst [vmem:[%s1322 + $0x1c] sm:%s1312] %v1337
                %v1339 = vld [vmem:[%s1321 + $0x20] sm:%s1312]
                %1340 = vst [vmem:[%s1322 + $0x20] sm:%s1312] %v1339
                %v1341 = vld [vmem:[%s1321 + $0x24] sm:%s1312]
                %1342 = vst [vmem:[%s1322 + $0x24] sm:%s1312] %v1341
                %v1343 = vld [vmem:[%s1321 + $0x28] sm:%s1312]
                %1344 = vst [vmem:[%s1322 + $0x28] sm:%s1312] %v1343
                %v1345 = vld [vmem:[%s1321 + $0x2c] sm:%s1312]
                %1346 = vst [vmem:[%s1322 + $0x2c] sm:%s1312] %v1345
                %v1347 = vld [vmem:[%s1321 + $0x30] sm:%s1312]
                %1348 = vst [vmem:[%s1322 + $0x30] sm:%s1312] %v1347
                %v1349 = vld [vmem:[%s1321 + $0x34] sm:%s1312]
                %1350 = vst [vmem:[%s1322 + $0x34] sm:%s1312] %v1349
                %v1351 = vld [vmem:[%s1321 + $0x38] sm:%s1312]
                %1352 = vst [vmem:[%s1322 + $0x38] sm:%s1312] %v1351
                %v1353 = vld [vmem:[%s1321 + $0x3c] sm:%s1312]
                %1354 = vst [vmem:[%s1322 + $0x3c] sm:%s1312] %v1353
                %v1355 = vld [vmem:[%s1321 + $0x40] sm:%s1312]
                %1356 = vst [vmem:[%s1322 + $0x40] sm:%s1312] %v1355
                %v1357 = vld [vmem:[%s1321 + $0x44] sm:%s1312]
                %1358 = vst [vmem:[%s1322 + $0x44] sm:%s1312] %v1357
                %v1359 = vld [vmem:[%s1321 + $0x48] sm:%s1312]
                %1360 = vst [vmem:[%s1322 + $0x48] sm:%s1312] %v1359
                %v1361 = vld [vmem:[%s1321 + $0x4c] sm:%s1312]
                %1362 = vst [vmem:[%s1322 + $0x4c] sm:%s1312] %v1361
                %v1363 = vld [vmem:[%s1321 + $0x50] sm:%s1312]
                %1364 = vst [vmem:[%s1322 + $0x50] sm:%s1312] %v1363
                %v1365 = vld [vmem:[%s1321 + $0x54] sm:%s1312]
                %1366 = vst [vmem:[%s1322 + $0x54] sm:%s1312] %v1365
                %v1367 = vld [vmem:[%s1321 + $0x58] sm:%s1312]
                %1368 = vst [vmem:[%s1322 + $0x58] sm:%s1312] %v1367
                %v1369 = vld [vmem:[%s1321 + $0x5c] sm:%s1312]
                %1370 = vst [vmem:[%s1322 + $0x5c] sm:%s1312] %v1369
                %v1371 = vld [vmem:[%s1321 + $0x60] sm:%s1312]
                %1372 = vst [vmem:[%s1322 + $0x60] sm:%s1312] %v1371
                %v1373 = vld [vmem:[%s1321 + $0x64] sm:%s1312]
                %1374 = vst [vmem:[%s1322 + $0x64] sm:%s1312] %v1373
                %v1375 = vld [vmem:[%s1321 + $0x68] sm:%s1312]
                %1376 = vst [vmem:[%s1322 + $0x68] sm:%s1312] %v1375
                %v1377 = vld [vmem:[%s1321 + $0x6c] sm:%s1312]
                %1378 = vst [vmem:[%s1322 + $0x6c] sm:%s1312] %v1377
                %v1379 = vld [vmem:[%s1321 + $0x70] sm:%s1312]
                %1380 = vst [vmem:[%s1322 + $0x70] sm:%s1312] %v1379
                %v1381 = vld [vmem:[%s1321 + $0x74] sm:%s1312]
                %1382 = vst [vmem:[%s1322 + $0x74] sm:%s1312] %v1381
                %v1383 = vld [vmem:[%s1321 + $0x78] sm:%s1312]
                %1384 = vst [vmem:[%s1322 + $0x78] sm:%s1312] %v1383
                %v1385 = vld [vmem:[%s1321 + $0x7c] sm:%s1312]
                %1386 = vst [vmem:[%s1322 + $0x7c] sm:%s1312] %v1385
                %v1387 = vld [vmem:[%s1321 + $0x80] sm:%s1312]
                %1388 = vst [vmem:[%s1322 + $0x80] sm:%s1312] %v1387
                %v1389 = vld [vmem:[%s1321 + $0x84] sm:%s1312]
                %1390 = vst [vmem:[%s1322 + $0x84] sm:%s1312] %v1389
                %v1391 = vld [vmem:[%s1321 + $0x88] sm:%s1312]
                %1392 = vst [vmem:[%s1322 + $0x88] sm:%s1312] %v1391
                %v1393 = vld [vmem:[%s1321 + $0x8c] sm:%s1312]
                %1394 = vst [vmem:[%s1322 + $0x8c] sm:%s1312] %v1393
                %v1395 = vld [vmem:[%s1321 + $0x90] sm:%s1312]
                %1396 = vst [vmem:[%s1322 + $0x90] sm:%s1312] %v1395
                %v1397 = vld [vmem:[%s1321 + $0x94] sm:%s1312]
                %1398 = vst [vmem:[%s1322 + $0x94] sm:%s1312] %v1397
                %v1399 = vld [vmem:[%s1321 + $0x98] sm:%s1312]
                %1400 = vst [vmem:[%s1322 + $0x98] sm:%s1312] %v1399
                %v1401 = vld [vmem:[%s1321 + $0x9c] sm:%s1312]
                %1402 = vst [vmem:[%s1322 + $0x9c] sm:%s1312] %v1401
                %v1403 = vld [vmem:[%s1321 + $0xa0] sm:%s1312]
                %1404 = vst [vmem:[%s1322 + $0xa0] sm:%s1312] %v1403
                %v1405 = vld [vmem:[%s1321 + $0xa4] sm:%s1312]
                %1406 = vst [vmem:[%s1322 + $0xa4] sm:%s1312] %v1405
                %v1407 = vld [vmem:[%s1321 + $0xa8] sm:%s1312]
                %1408 = vst [vmem:[%s1322 + $0xa8] sm:%s1312] %v1407
                %v1409 = vld [vmem:[%s1321 + $0xac] sm:%s1312]
                %1410 = vst [vmem:[%s1322 + $0xac] sm:%s1312] %v1409
                %v1411 = vld [vmem:[%s1321 + $0xb0] sm:%s1312]
                %1412 = vst [vmem:[%s1322 + $0xb0] sm:%s1312] %v1411
                %v1413 = vld [vmem:[%s1321 + $0xb4] sm:%s1312]
                %1414 = vst [vmem:[%s1322 + $0xb4] sm:%s1312] %v1413
                %v1415 = vld [vmem:[%s1321 + $0xb8] sm:%s1312]
                %1416 = vst [vmem:[%s1322 + $0xb8] sm:%s1312] %v1415
                %v1417 = vld [vmem:[%s1321 + $0xbc] sm:%s1312]
                %1418 = vst [vmem:[%s1322 + $0xbc] sm:%s1312] %v1417
                %v1419 = vld [vmem:[%s1321 + $0xc0] sm:%s1312]
                %1420 = vst [vmem:[%s1322 + $0xc0] sm:%s1312] %v1419
                %v1421 = vld [vmem:[%s1321 + $0xc4] sm:%s1312]
                %1422 = vst [vmem:[%s1322 + $0xc4] sm:%s1312] %v1421
                %v1423 = vld [vmem:[%s1321 + $0xc8] sm:%s1312]
                %1424 = vst [vmem:[%s1322 + $0xc8] sm:%s1312] %v1423
                %v1425 = vld [vmem:[%s1321 + $0xcc] sm:%s1312]
                %1426 = vst [vmem:[%s1322 + $0xcc] sm:%s1312] %v1425
                %v1427 = vld [vmem:[%s1321 + $0xd0] sm:%s1312]
                %1428 = vst [vmem:[%s1322 + $0xd0] sm:%s1312] %v1427
                %v1429 = vld [vmem:[%s1321 + $0xd4] sm:%s1312]
                %1430 = vst [vmem:[%s1322 + $0xd4] sm:%s1312] %v1429
                %v1431 = vld [vmem:[%s1321 + $0xd8] sm:%s1312]
                %1432 = vst [vmem:[%s1322 + $0xd8] sm:%s1312] %v1431
                %v1433 = vld [vmem:[%s1321 + $0xdc] sm:%s1312]
                %1434 = vst [vmem:[%s1322 + $0xdc] sm:%s1312] %v1433
                %v1435 = vld [vmem:[%s1321 + $0xe0] sm:%s1312]
                %1436 = vst [vmem:[%s1322 + $0xe0] sm:%s1312] %v1435
                %v1437 = vld [vmem:[%s1321 + $0xe4] sm:%s1312]
                %1438 = vst [vmem:[%s1322 + $0xe4] sm:%s1312] %v1437
                %v1439 = vld [vmem:[%s1321 + $0xe8] sm:%s1312]
                %1440 = vst [vmem:[%s1322 + $0xe8] sm:%s1312] %v1439
                %v1441 = vld [vmem:[%s1321 + $0xec] sm:%s1312]
                %1442 = vst [vmem:[%s1322 + $0xec] sm:%s1312] %v1441
                %v1443 = vld [vmem:[%s1321 + $0xf0] sm:%s1312]
                %1444 = vst [vmem:[%s1322 + $0xf0] sm:%s1312] %v1443
                %v1445 = vld [vmem:[%s1321 + $0xf4] sm:%s1312]
                %1446 = vst [vmem:[%s1322 + $0xf4] sm:%s1312] %v1445
                %v1447 = vld [vmem:[%s1321 + $0xf8] sm:%s1312]
                %1448 = vst [vmem:[%s1322 + $0xf8] sm:%s1312] %v1447
                %v1449 = vld [vmem:[%s1321 + $0xfc] sm:%s1312]
                %1450 = vst [vmem:[%s1322 + $0xfc] sm:%s1312] %v1449
                %s1451 = sadd.s32 1, %s1320
                %p1452 = scmp.ge.s32.totalorder %s1451, %s1313
                %s1453 = scalar_select %p1452, 0, %s1451
                %s1454 = smul.u32 %s1453, 256
                %s1455 = smul.u32 %s1453, 256
                %s1456 = scalar_lea.vmem %s1289, %s1454 [#allocation2]
                %s1457 = scalar_lea.vmem %s1303, %s1455
              $region53: #{tpu_custom_call.1} parent=47 // loop_footer
                %s1317 = sadd.s32 %s1315, 1
              $region54: #{tpu_custom_call.1} parent=47 // loop_footer_branch
                %1314 = sbr.rel target = $region50
              $region55: #{tpu_custom_call.1} parent=47 // loop_exit
                _
              %s1458 = sshrl.u32 %s1296, 6
              %s1459 = sand.u32 %s1296, 63
              %s1460 = smul.u32 %s1458, 64
              %s1461 = smul.u32 4, %s1460
              %s1462 = scalar_lea.vmem %s1289, %s1461 [#allocation2]
              %s1463 = smul.u32 4, %s1460
              %s1464 = scalar_lea.vmem %s1303, %s1463
              // While loop
              $region56: #{tpu_custom_call.1} parent=47 // loop_pre_header
                _
              $region57: #{tpu_custom_call.1} parent=47 // loop_header
                %s1466 = sphi 0, %s1468
                %p1467 = scmp.ge.s32.totalorder %s1466, %s1459
                %s1471 = sphi 0, %s1478
                %s1472 = sphi %s1462, %s1481
                %s1473 = sphi %s1464, %s1482
              $region58: #{tpu_custom_call.1} parent=47 // loop_header_branch
                %1470 = sbr.rel (%p1467) target = $region62
              $region59: #{tpu_custom_call.1} parent=47 // loop_body
                %v1474 = vld [vmem:[%s1472] sm:%s1312]
                %1475 = vst [vmem:[%s1473] sm:%s1312] %v1474
                %s1476 = sadd.s32 1, %s1471
                %p1477 = scmp.ge.s32.totalorder %s1476, %s1459
                %s1478 = scalar_select %p1477, 0, %s1476
                %s1479 = smul.u32 %s1478, 4
                %s1480 = smul.u32 %s1478, 4
                %s1481 = scalar_lea.vmem %s1462, %s1479 [#allocation2]
                %s1482 = scalar_lea.vmem %s1464, %s1480
              $region60: #{tpu_custom_call.1} parent=47 // loop_footer
                %s1468 = sadd.s32 %s1466, 1
              $region61: #{tpu_custom_call.1} parent=47 // loop_footer_branch
                %1465 = sbr.rel target = $region57
              $region62: #{tpu_custom_call.1} parent=47 // loop_exit
                _
            $region48: #{tpu_custom_call.1} parent=39 // pred_fallthru
              _
          $region40: #{tpu_custom_call.1} parent=35 // pred_fallthru
            _
          %1657 = vnop
        $region36: #{tpu_custom_call.1} parent=31 // pred_fallthru
          _
      $region32: #{tpu_custom_call.1} parent=5 // pred_fallthru
        _
      %p1658 = scmp.le.s32.totalorder 2, %s9
      // Predicated region
      $region81: #{tpu_custom_call.1} parent=5 // pred_check
        %p1659 = pneg %p1658
      $region82: #{tpu_custom_call.1} parent=5 // pred_check_branch
        %1661 = sbr.rel (%p1659) target = $region84
      $region83: #{tpu_custom_call.1} parent=5 // pred_region
        %s1662 = ssub.s32 %s9, 2
        // Predicated region
        $region85: #{tpu_custom_call.1} parent=83 // pred_check
          %p1663 = pneg %p145
        $region86: #{tpu_custom_call.1} parent=83 // pred_check_branch
          %1665 = sbr.rel (%p1663) target = $region88
        $region87: #{tpu_custom_call.1} parent=83 // pred_region
          %s1666 = sand.u32 %s130, 1
          %s1667 = sand.u32 %s130, 1
          %s1668 = smul.addr %s1667, 256
          %s1669 = scalar_lea.vmem [#allocation2], %s1668
        $region88: #{tpu_custom_call.1} parent=83 // pred_fallthru
          _
      $region84: #{tpu_custom_call.1} parent=5 // pred_fallthru
        _
    $region6: #{tpu_custom_call.1} parent=1 // loop_footer
      %s13 = sadd.s32 1, %s9
    $region7: #{tpu_custom_call.1} parent=1 // loop_footer_branch
      %8 = sbr.rel target = $region3
    $region8: #{tpu_custom_call.1} parent=1 // loop_exit
      _

</llo_original>
